<compile_context>
chip_gen: v7x
topology: tpu7x:2x2x1
jax: 0.10.0
libtpu: 0.0.40
codegen_flags: <defaults>
</compile_context>

<pallas_src>
import functools

import jax
import jax.numpy as jnp
from jax import lax
from jax.experimental import pallas as pl
from jax.experimental.pallas import tpu as pltpu

BIG = 1e30  # "infinite" distance: masks cross-batch pairs / already-picked neighbors


def _round_up(a, m):
    return ((a + m - 1) // m) * m


def _recip(x):
    """EUP-seeded reciprocal + one Newton step (full f32 accuracy on tiny [tq,1] operands)."""
    r = pl.reciprocal(x, approx=True)
    return r * (2.0 - x * r)


def _fp_kernel(q_aug_ref, src_aug_ref, batch_q_ref, batch_s_ref,
               xw1a_ref, skip_ref, w2_ref, b2_ref, out_ref, *, k, mxu_dtype):
    # ---- pairwise squared distances entirely on the MXU ----
    # q_aug = [pos_q | ||pos_q||^2 | 1],  src_aug = [-2*pos_s ; ones ; ||pos_s||^2]
    #   => dot = ||q||^2 + ||s||^2 - 2 q.s
    d2 = jnp.dot(q_aug_ref[...], src_aug_ref[...], preferred_element_type=jnp.float32)
    d2 = jnp.maximum(d2, 0.0)                                # clamp cancellation residue
    same_batch = batch_q_ref[...] == batch_s_ref[...]        # [tq,1]==[1,Ns] -> [tq,Ns]
    d2 = jnp.where(same_batch, d2, BIG)
    # TODO(synk): fold the batch penalty into the matmul only with a data-derived alpha
    # (alpha^2 >> max d2); kept as an explicit mask here for numerical safety.

    # ---- iterative k-nearest selection: sparse weight matrix W + accumulated weight sum ----
    # TODO(synk): exact f32 ties select >k neighbors; assumes >= k sources per batch element
    # (same assumptions as torch_geometric's knn used by knn_interpolate).
    W = jnp.zeros_like(d2)
    denom = jnp.zeros((d2.shape[0], 1), jnp.float32)
    for i in range(k):
        min_d = jnp.min(d2, axis=-1, keepdims=True)          # [tq,1]  (XLU reduce)
        onehot = d2 == min_d
        w = _recip(jnp.maximum(min_d, 1e-16))                 # knn_interpolate weight 1/d^2
        W = jnp.where(onehot, w, W)                           # picks are disjoint -> no add
        denom = denom + w                                     # [tq,1] normalizer
        if i + 1 < k:                                         # last invalidation not needed
            d2 = jnp.where(onehot, BIG, d2)

    # ---- interpolation fused with the first MLP layer ----
    acc = jnp.dot(W.astype(mxu_dtype), xw1a_ref[...],
                  preferred_element_type=jnp.float32)          # [tq, h_pad]
    h = acc * _recip(denom) + skip_ref[...]                    # skip = x_skip@W1b + b1 (hoisted)
    h = jnp.maximum(h, 0.0)
    out_ref[...] = (jnp.dot(h.astype(mxu_dtype), w2_ref[...],
                            preferred_element_type=jnp.float32) + b2_ref[...])


def fp_module_forward(x, pos, batch, x_skip, pos_skip, batch_skip, params,
                      k=3, tq=256, mxu_dtype=jnp.float32):
    """Pallas implementation of FPModule.forward. Returns (features, pos_skip, batch_skip)."""
    w1, b1, w2, b2 = params
    f_in = x.shape[1]
    hidden = w1.shape[1]
    c_out = w2.shape[1]
    nq = pos_skip.shape[0]
    ns = pos.shape[0]
    f32 = jnp.float32

    # ---- lane-dense padded dims (no extra denominator column anymore) ----
    h_pad = _round_up(hidden, 128)
    c_pad = _round_up(c_out, 128)
    ns_pad = _round_up(ns, 128)

    # ---- parameter / source prep (once, outside the kernel) ----
    w1a = w1[:f_in].astype(f32)           # split W1: concat -> two matmuls
    w1b = w1[f_in:].astype(f32)

    # mean-center positions: free, improves ||q||^2+||s||^2-2q.s conditioning
    center = jnp.mean(pos.astype(f32), axis=0)
    pos_s_c = pos.astype(f32) - center
    pos_q_c = pos_skip.astype(f32) - center

    # source-side constants (index-invariant across the query grid)
    src_aug = jnp.zeros((5, ns_pad), f32)
    src_aug = src_aug.at[:3, :ns].set(-2.0 * pos_s_c.T)
    src_aug = src_aug.at[3, :ns].set(1.0)                         # pairs with ||q||^2 column
    src_aug = src_aug.at[4, :ns].set(jnp.sum(pos_s_c * pos_s_c, axis=1))
    batch_s = jnp.full((1, ns_pad), -2, jnp.int32).at[0, :ns].set(batch.astype(jnp.int32))
    xw1a = jnp.zeros((ns_pad, h_pad), f32).at[:ns, :hidden].set(x.astype(f32) @ w1a)
    xw1a = xw1a.astype(mxu_dtype)
    w2_p = jnp.zeros((h_pad, c_pad), f32).at[:hidden, :c_out].set(w2.astype(f32))
    w2_p = w2_p.astype(mxu_dtype)
    b2_p = jnp.zeros((1, c_pad), f32).at[0, :c_out].set(b2.astype(f32))

    # ---- generation-aware VMEM budget & query-tile sizing ----
    try:
        vmem_cap = int(pltpu.get_tpu_info().vmem_capacity_bytes)
    except Exception:
        vmem_cap = 64 * 1024 * 1024                      # conservative (v7x-sized) default
    scoped_target = (96 if vmem_cap >= 100 * 1024 * 1024 else 40) * 1024 * 1024
    bpe = jnp.dtype(mxu_dtype).itemsize

    def vmem_need(t):
        resident = ((5 + 1) * ns_pad * 4 + ns_pad * h_pad * bpe
                    + h_pad * c_pad * bpe + c_pad * 4)             # single-buffered constants
        per_tile = 2 * t * (5 + 1 + h_pad + c_pad) * 4             # double-buffered tiles
        interm = 6 * t * ns_pad * 4 + 2 * t * h_pad * 4            # d2/W/masks + acc/h live
        return resident + per_tile + interm

    tq = max(8, (min(int(tq), _round_up(nq, 8)) // 8) * 8)
    while tq > 128 and vmem_need(tq) > scoped_target:              # keep >=1 MXU row-pass
        tq = max(128, (tq // 2 // 8) * 8)
    while tq > 8 and vmem_need(tq) > scoped_target:                # last resort (huge Ns)
        tq = max(8, (tq // 2 // 8) * 8)
    if nq > 8:                                                     # >=2 tiles -> both v7x TCs
        tq = min(tq, max(8, _round_up((nq + 1) // 2, 8)))
    nq_pad = _round_up(nq, tq)
    vmem_limit = int(max(32 * 1024 * 1024,
                         min(vmem_cap - 16 * 1024 * 1024,
                             scoped_target + 8 * 1024 * 1024)))

    # query-side tiled inputs (padded rows get batch id -1 so they never match a source)
    q_aug = jnp.zeros((nq_pad, 5), f32)
    q_aug = q_aug.at[:nq, :3].set(pos_q_c)
    q_aug = q_aug.at[:nq, 3].set(jnp.sum(pos_q_c * pos_q_c, axis=1))
    q_aug = q_aug.at[:nq, 4].set(1.0)
    batch_q = jnp.full((nq_pad, 1), -1, jnp.int32).at[:nq, 0].set(batch_skip.astype(jnp.int32))
    skip_proj = jnp.zeros((nq_pad, h_pad), f32).at[:nq, :hidden].set(
        x_skip.astype(f32) @ w1b + b1.astype(f32))

    kernel = functools.partial(_fp_kernel, k=k, mxu_dtype=mxu_dtype)
    grid = (nq_pad // tq,)

    def call(single_buffer_consts):
        def const_spec(shape):
            if single_buffer_consts:
                return pl.BlockSpec(shape, lambda i: (0, 0), pipeline_mode=pl.Buffered(1))
            return pl.BlockSpec(shape, lambda i: (0, 0))

        return pl.pallas_call(
            kernel,
            out_shape=jax.ShapeDtypeStruct((nq_pad, c_pad), f32),
            grid_spec=pltpu.PrefetchScalarGridSpec(
                num_scalar_prefetch=0,
                grid=grid,
                in_specs=[
                    pl.BlockSpec((tq, 5), lambda i: (i, 0)),       # [pos_q | ||q||^2 | 1]
                    const_spec((5, ns_pad)),                       # [-2*pos_s ; 1 ; ||s||^2]
                    pl.BlockSpec((tq, 1), lambda i: (i, 0)),       # batch_skip tile
                    const_spec((1, ns_pad)),                       # source batch ids
                    const_spec((ns_pad, h_pad)),                   # x @ W1a (padded)
                    pl.BlockSpec((tq, h_pad), lambda i: (i, 0)),   # x_skip @ W1b + b1 (hoisted)
                    const_spec((h_pad, c_pad)),                    # W2 (padded)
                    const_spec((1, c_pad)),                        # b2 (padded)
                ],
                out_specs=pl.BlockSpec((tq, c_pad), lambda i: (i, 0)),
            ),
            compiler_params=pltpu.CompilerParams(
                dimension_semantics=("parallel",),
                vmem_limit_bytes=vmem_limit,
            ),
        )(q_aug, src_aug, batch_q, batch_s, xw1a, skip_proj, w2_p, b2_p)

    try:
        out = jax.block_until_ready(call(True))
    except Exception:
        # Fallback if the installed jax/Mosaic rejects pipeline_mode=pl.Buffered(1);
        # identical kernel, default double-buffered constants.
        out = jax.block_until_ready(call(False))

    return out[:nq, :c_out], pos_skip, batch_skip


def _ref_forward(x, pos, batch, x_skip, pos_skip, batch_skip, params, k=3):
    """Pure-JAX reference for correctness checking."""
    w1, b1, w2, b2 = params
    diff = pos_skip[:, None, :] - pos[None, :, :]
    d2 = (diff * diff).sum(-1)
    d2 = jnp.where(batch_skip[:, None] == batch[None, :], d2, BIG)
    neg_vals, idx = lax.top_k(-d2, k)
    dists = -neg_vals
    w = 1.0 / jnp.maximum(dists, 1e-16)                  # [Nq, k]
    feats = x[idx]                                       # [Nq, k, F]
    y = (feats * w[..., None]).sum(1) / w.sum(1, keepdims=True)
    z = jnp.concatenate([y, x_skip], axis=1)
    h = jnp.maximum(z @ w1 + b1, 0.0)
    return h @ w2 + b2


if __name__ == "__main__":
    key = jax.random.PRNGKey(0)
    ks = jax.random.split(key, 8)

    # small deterministic example: 2 batch elements
    B = 2
    ns_per, nq_per = 8, 16
    Ns, Nq = B * ns_per, B * nq_per
    F, F_skip, H, C_out = 8, 8, 32, 16
    k = 3

    x = jax.random.normal(ks[0], (Ns, F), jnp.float32)            # coarse features
    pos = jax.random.normal(ks[1], (Ns, 3), jnp.float32)          # coarse positions
    batch = jnp.repeat(jnp.arange(B, dtype=jnp.int32), ns_per)
    x_skip = jax.random.normal(ks[2], (Nq, F_skip), jnp.float32)  # skip features
    pos_skip = jax.random.normal(ks[3], (Nq, 3), jnp.float32)     # fine positions
    batch_skip = jnp.repeat(jnp.arange(B, dtype=jnp.int32), nq_per)

    # deterministic MLP parameters: Linear(F+F_skip,H) -> ReLU -> Linear(H,C_out)
    w1 = 0.1 * jax.random.normal(ks[4], (F + F_skip, H), jnp.float32)
    b1 = 0.1 * jax.random.normal(ks[5], (H,), jnp.float32)
    w2 = 0.1 * jax.random.normal(ks[6], (H, C_out), jnp.float32)
    b2 = 0.1 * jax.random.normal(ks[7], (C_out,), jnp.float32)
    params = (w1, b1, w2, b2)

    # tq=16 -> 2 query tiles: exercises the pipelined / parallel grid path
    out, out_pos, out_batch = fp_module_forward(
        x, pos, batch, x_skip, pos_skip, batch_skip, params, k=k, tq=16)
    out = jax.block_until_ready(out)

    ref = _ref_forward(x, pos, batch, x_skip, pos_skip, batch_skip, params, k=k)
    assert out.shape == (Nq, C_out)
    assert jnp.allclose(out, ref, atol=1e-3, rtol=1e-3), \
        f"max abs err = {jnp.max(jnp.abs(out - ref))}"

    print("KERNEL_OK")
</pallas_src>

<mosaic_0001>
module attributes {stable_mosaic.version = 11 : i64} {
  func.func @_fp_kernel(%arg0: i32, %arg1: memref<16x5xf32, #tpu.memory_space<vmem>>, %arg2: memref<5x128xf32, #tpu.memory_space<vmem>>, %arg3: memref<16x1xi32, #tpu.memory_space<vmem>>, %arg4: memref<1x128xi32, #tpu.memory_space<vmem>>, %arg5: memref<128x128xf32, #tpu.memory_space<vmem>>, %arg6: memref<16x128xf32, #tpu.memory_space<vmem>>, %arg7: memref<128x128xf32, #tpu.memory_space<vmem>>, %arg8: memref<1x128xf32, #tpu.memory_space<vmem>>, %arg9: memref<16x128xf32, #tpu.memory_space<vmem>>) attributes {dimension_semantics = [#tpu.dimension_semantics<parallel>], iteration_bounds = array<i64: 2>, scalar_prefetch = 0 : i64, scratch_operands = 0 : i64, tpu.core_type = #tpu.core_type<tc>, window_params = [{transform_indices = @transform_0, window_bounds = array<i64: 16, 5>}, {pipeline_mode = #tpu.pipeline_mode<synchronous>, transform_indices = @transform_1, window_bounds = array<i64: 5, 128>}, {transform_indices = @transform_2, window_bounds = array<i64: 16, 1>}, {pipeline_mode = #tpu.pipeline_mode<synchronous>, transform_indices = @transform_3, window_bounds = array<i64: 1, 128>}, {pipeline_mode = #tpu.pipeline_mode<synchronous>, transform_indices = @transform_4, window_bounds = array<i64: 128, 128>}, {transform_indices = @transform_5, window_bounds = array<i64: 16, 128>}, {pipeline_mode = #tpu.pipeline_mode<synchronous>, transform_indices = @transform_6, window_bounds = array<i64: 128, 128>}, {pipeline_mode = #tpu.pipeline_mode<synchronous>, transform_indices = @transform_7, window_bounds = array<i64: 1, 128>}, {transform_indices = @transform_8, window_bounds = array<i64: 16, 128>}]} {
    %c0 = arith.constant 0 : index
    %c0_0 = arith.constant 0 : index
    %0 = vector.load %arg1[%c0, %c0_0] : memref<16x5xf32, #tpu.memory_space<vmem>>, vector<16x5xf32>
    %c0_1 = arith.constant 0 : index
    %c0_2 = arith.constant 0 : index
    %1 = vector.load %arg2[%c0_1, %c0_2] : memref<5x128xf32, #tpu.memory_space<vmem>>, vector<5x128xf32>
    %cst = arith.constant dense<0.000000e+00> : vector<16x128xf32>
    %2 = tpu.matmul %0, %1, %cst {dimension_numbers = #tpu.dot_dimension_numbers<[1], [0], [0], [1], [0, 0, 1, 1], [], []>} : vector<16x5xf32>, vector<5x128xf32>, vector<16x128xf32> -> vector<16x128xf32>
    %cst_3 = arith.constant 0.000000e+00 : f32
    %3 = vector.broadcast %cst_3 : f32 to vector<16x128xf32>
    %4 = arith.maximumf %2, %3 : vector<16x128xf32>
    %c0_4 = arith.constant 0 : index
    %c0_5 = arith.constant 0 : index
    %5 = vector.load %arg3[%c0_4, %c0_5] : memref<16x1xi32, #tpu.memory_space<vmem>>, vector<16x1xi32>
    %c0_6 = arith.constant 0 : index
    %c0_7 = arith.constant 0 : index
    %6 = vector.load %arg4[%c0_6, %c0_7] : memref<1x128xi32, #tpu.memory_space<vmem>>, vector<1x128xi32>
    %7 = vector.broadcast %5 : vector<16x1xi32> to vector<16x128xi32>
    %8 = vector.broadcast %6 : vector<1x128xi32> to vector<16x128xi32>
    %9 = arith.cmpi eq, %7, %8 : vector<16x128xi32>
    %cst_8 = arith.constant 1.000000e+30 : f32
    %10 = vector.broadcast %cst_8 : f32 to vector<16x128xf32>
    %11 = arith.select %9, %4, %10 : vector<16x128xi1>, vector<16x128xf32>
    %cst_9 = arith.constant 0.000000e+00 : f32
    %12 = vector.broadcast %cst_9 : f32 to vector<16x128xf32>
    %cst_10 = arith.constant 0.000000e+00 : f32
    %13 = vector.broadcast %cst_10 : f32 to vector<16x1xf32>
    %cst_11 = arith.constant dense<0x7F800000> : vector<16xf32>
    %14 = vector.multi_reduction <minimumf>, %11, %cst_11 [1] : vector<16x128xf32> to vector<16xf32>
    %15 = vector.shape_cast %14 : vector<16xf32> to vector<16x1xf32>
    %16 = vector.broadcast %15 : vector<16x1xf32> to vector<16x128xf32>
    %17 = arith.cmpf oeq, %11, %16 : vector<16x128xf32>
    %cst_12 = arith.constant 1.000000e-16 : f32
    %18 = vector.broadcast %cst_12 : f32 to vector<16x1xf32>
    %19 = arith.maximumf %15, %18 : vector<16x1xf32>
    %20 = tpu.reciprocal %19 {approx = true} : vector<16x1xf32> -> vector<16x1xf32>
    %21 = arith.mulf %19, %20 : vector<16x1xf32>
    %cst_13 = arith.constant 2.000000e+00 : f32
    %22 = vector.broadcast %cst_13 : f32 to vector<16x1xf32>
    %23 = arith.subf %22, %21 : vector<16x1xf32>
    %24 = arith.mulf %20, %23 : vector<16x1xf32>
    %25 = vector.shape_cast %24 : vector<16x1xf32> to vector<16x1xf32>
    %26 = vector.broadcast %25 : vector<16x1xf32> to vector<16x128xf32>
    %27 = arith.select %17, %26, %12 : vector<16x128xi1>, vector<16x128xf32>
    %28 = arith.addf %13, %24 : vector<16x1xf32>
    %cst_14 = arith.constant 1.000000e+30 : f32
    %29 = vector.broadcast %cst_14 : f32 to vector<16x128xf32>
    %30 = arith.select %17, %29, %11 : vector<16x128xi1>, vector<16x128xf32>
    %cst_15 = arith.constant dense<0x7F800000> : vector<16xf32>
    %31 = vector.multi_reduction <minimumf>, %30, %cst_15 [1] : vector<16x128xf32> to vector<16xf32>
    %32 = vector.shape_cast %31 : vector<16xf32> to vector<16x1xf32>
    %33 = vector.broadcast %32 : vector<16x1xf32> to vector<16x128xf32>
    %34 = arith.cmpf oeq, %30, %33 : vector<16x128xf32>
    %cst_16 = arith.constant 1.000000e-16 : f32
    %35 = vector.broadcast %cst_16 : f32 to vector<16x1xf32>
    %36 = arith.maximumf %32, %35 : vector<16x1xf32>
    %37 = tpu.reciprocal %36 {approx = true} : vector<16x1xf32> -> vector<16x1xf32>
    %38 = arith.mulf %36, %37 : vector<16x1xf32>
    %cst_17 = arith.constant 2.000000e+00 : f32
    %39 = vector.broadcast %cst_17 : f32 to vector<16x1xf32>
    %40 = arith.subf %39, %38 : vector<16x1xf32>
    %41 = arith.mulf %37, %40 : vector<16x1xf32>
    %42 = vector.shape_cast %41 : vector<16x1xf32> to vector<16x1xf32>
    %43 = vector.broadcast %42 : vector<16x1xf32> to vector<16x128xf32>
    %44 = arith.select %34, %43, %27 : vector<16x128xi1>, vector<16x128xf32>
    %45 = arith.addf %28, %41 : vector<16x1xf32>
    %cst_18 = arith.constant 1.000000e+30 : f32
    %46 = vector.broadcast %cst_18 : f32 to vector<16x128xf32>
    %47 = arith.select %34, %46, %30 : vector<16x128xi1>, vector<16x128xf32>
    %cst_19 = arith.constant dense<0x7F800000> : vector<16xf32>
    %48 = vector.multi_reduction <minimumf>, %47, %cst_19 [1] : vector<16x128xf32> to vector<16xf32>
    %49 = vector.shape_cast %48 : vector<16xf32> to vector<16x1xf32>
    %50 = vector.broadcast %49 : vector<16x1xf32> to vector<16x128xf32>
    %51 = arith.cmpf oeq, %47, %50 : vector<16x128xf32>
    %cst_20 = arith.constant 1.000000e-16 : f32
    %52 = vector.broadcast %cst_20 : f32 to vector<16x1xf32>
    %53 = arith.maximumf %49, %52 : vector<16x1xf32>
    %54 = tpu.reciprocal %53 {approx = true} : vector<16x1xf32> -> vector<16x1xf32>
    %55 = arith.mulf %53, %54 : vector<16x1xf32>
    %cst_21 = arith.constant 2.000000e+00 : f32
    %56 = vector.broadcast %cst_21 : f32 to vector<16x1xf32>
    %57 = arith.subf %56, %55 : vector<16x1xf32>
    %58 = arith.mulf %54, %57 : vector<16x1xf32>
    %59 = vector.shape_cast %58 : vector<16x1xf32> to vector<16x1xf32>
    %60 = vector.broadcast %59 : vector<16x1xf32> to vector<16x128xf32>
    %61 = arith.select %51, %60, %44 : vector<16x128xi1>, vector<16x128xf32>
    %62 = arith.addf %45, %58 : vector<16x1xf32>
    %c0_22 = arith.constant 0 : index
    %c0_23 = arith.constant 0 : index
    %63 = vector.load %arg5[%c0_22, %c0_23] : memref<128x128xf32, #tpu.memory_space<vmem>>, vector<128x128xf32>
    %cst_24 = arith.constant dense<0.000000e+00> : vector<16x128xf32>
    %64 = tpu.matmul %61, %63, %cst_24 {dimension_numbers = #tpu.dot_dimension_numbers<[1], [0], [0], [1], [0, 0, 1, 1], [], []>} : vector<16x128xf32>, vector<128x128xf32>, vector<16x128xf32> -> vector<16x128xf32>
    %65 = tpu.reciprocal %62 {approx = true} : vector<16x1xf32> -> vector<16x1xf32>
    %66 = arith.mulf %62, %65 : vector<16x1xf32>
    %cst_25 = arith.constant 2.000000e+00 : f32
    %67 = vector.broadcast %cst_25 : f32 to vector<16x1xf32>
    %68 = arith.subf %67, %66 : vector<16x1xf32>
    %69 = arith.mulf %65, %68 : vector<16x1xf32>
    %70 = vector.broadcast %69 : vector<16x1xf32> to vector<16x128xf32>
    %71 = arith.mulf %64, %70 : vector<16x128xf32>
    %c0_26 = arith.constant 0 : index
    %c0_27 = arith.constant 0 : index
    %72 = vector.load %arg6[%c0_26, %c0_27] : memref<16x128xf32, #tpu.memory_space<vmem>>, vector<16x128xf32>
    %73 = arith.addf %71, %72 : vector<16x128xf32>
    %cst_28 = arith.constant 0.000000e+00 : f32
    %74 = vector.broadcast %cst_28 : f32 to vector<16x128xf32>
    %75 = arith.maximumf %73, %74 : vector<16x128xf32>
    %c0_29 = arith.constant 0 : index
    %c0_30 = arith.constant 0 : index
    %76 = vector.load %arg7[%c0_29, %c0_30] : memref<128x128xf32, #tpu.memory_space<vmem>>, vector<128x128xf32>
    %cst_31 = arith.constant dense<0.000000e+00> : vector<16x128xf32>
    %77 = tpu.matmul %75, %76, %cst_31 {dimension_numbers = #tpu.dot_dimension_numbers<[1], [0], [0], [1], [0, 0, 1, 1], [], []>} : vector<16x128xf32>, vector<128x128xf32>, vector<16x128xf32> -> vector<16x128xf32>
    %c0_32 = arith.constant 0 : index
    %c0_33 = arith.constant 0 : index
    %78 = vector.load %arg8[%c0_32, %c0_33] : memref<1x128xf32, #tpu.memory_space<vmem>>, vector<1x128xf32>
    %79 = vector.broadcast %78 : vector<1x128xf32> to vector<16x128xf32>
    %80 = arith.addf %77, %79 : vector<16x128xf32>
    %c0_34 = arith.constant 0 : index
    %c0_35 = arith.constant 0 : index
    %81 = vector.load %arg9[%c0_34, %c0_35] : memref<16x128xf32, #tpu.memory_space<vmem>>, vector<16x128xf32>
    tpu.vector_store %arg9[%c0_34, %c0_35], %80 {strides = array<i32>} : memref<16x128xf32, #tpu.memory_space<vmem>>, vector<16x128xf32>,
    return
  }
  func.func @transform_0(%arg0: i32) -> (i32, i32) {
    %c0_i32 = arith.constant 0 : i32
    %c0_i32_0 = arith.constant 0 : i32
    return %arg0, %c0_i32 : i32, i32
  }
  func.func @transform_1(%arg0: i32) -> (i32, i32) {
    %c0_i32 = arith.constant 0 : i32
    %c0_i32_0 = arith.constant 0 : i32
    %c0_i32_1 = arith.constant 0 : i32
    return %c0_i32, %c0_i32_0 : i32, i32
  }
  func.func @transform_2(%arg0: i32) -> (i32, i32) {
    %c0_i32 = arith.constant 0 : i32
    %c0_i32_0 = arith.constant 0 : i32
    return %arg0, %c0_i32 : i32, i32
  }
  func.func @transform_3(%arg0: i32) -> (i32, i32) {
    %c0_i32 = arith.constant 0 : i32
    %c0_i32_0 = arith.constant 0 : i32
    %c0_i32_1 = arith.constant 0 : i32
    return %c0_i32, %c0_i32_0 : i32, i32
  }
  func.func @transform_4(%arg0: i32) -> (i32, i32) {
    %c0_i32 = arith.constant 0 : i32
    %c0_i32_0 = arith.constant 0 : i32
    %c0_i32_1 = arith.constant 0 : i32
    return %c0_i32, %c0_i32_0 : i32, i32
  }
  func.func @transform_5(%arg0: i32) -> (i32, i32) {
    %c0_i32 = arith.constant 0 : i32
    %c0_i32_0 = arith.constant 0 : i32
    return %arg0, %c0_i32 : i32, i32
  }
  func.func @transform_6(%arg0: i32) -> (i32, i32) {
    %c0_i32 = arith.constant 0 : i32
    %c0_i32_0 = arith.constant 0 : i32
    %c0_i32_1 = arith.constant 0 : i32
    return %c0_i32, %c0_i32_0 : i32, i32
  }
  func.func @transform_7(%arg0: i32) -> (i32, i32) {
    %c0_i32 = arith.constant 0 : i32
    %c0_i32_0 = arith.constant 0 : i32
    %c0_i32_1 = arith.constant 0 : i32
    return %c0_i32, %c0_i32_0 : i32, i32
  }
  func.func @transform_8(%arg0: i32) -> (i32, i32) {
    %c0_i32 = arith.constant 0 : i32
    %c0_i32_0 = arith.constant 0 : i32
    return %arg0, %c0_i32 : i32, i32
  }
}

module attributes {stable_mosaic.version = 11 : i64} {
  func.func @_fp_kernel(%arg0: i32, %arg1: memref<16x5xf32, #tpu.memory_space<vmem>>, %arg2: memref<5x128xf32, #tpu.memory_space<vmem>>, %arg3: memref<16x1xi32, #tpu.memory_space<vmem>>, %arg4: memref<1x128xi32, #tpu.memory_space<vmem>>, %arg5: memref<128x128xf32, #tpu.memory_space<vmem>>, %arg6: memref<16x128xf32, #tpu.memory_space<vmem>>, %arg7: memref<128x128xf32, #tpu.memory_space<vmem>>, %arg8: memref<1x128xf32, #tpu.memory_space<vmem>>, %arg9: memref<16x128xf32, #tpu.memory_space<vmem>>) attributes {dimension_semantics = [#tpu.dimension_semantics<parallel>], iteration_bounds = array<i64: 2>, scalar_prefetch = 0 : i64, scratch_operands = 0 : i64, tpu.core_type = #tpu.core_type<tc>, window_params = [{transform_indices = @transform_0, window_bounds = array<i64: 16, 5>}, {pipeline_mode = #tpu.pipeline_mode<synchronous>, transform_indices = @transform_1, window_bounds = array<i64: 5, 128>}, {transform_indices = @transform_2, window_bounds = array<i64: 16, 1>}, {pipeline_mode = #tpu.pipeline_mode<synchronous>, transform_indices = @transform_3, window_bounds = array<i64: 1, 128>}, {pipeline_mode = #tpu.pipeline_mode<synchronous>, transform_indices = @transform_4, window_bounds = array<i64: 128, 128>}, {transform_indices = @transform_5, window_bounds = array<i64: 16, 128>}, {pipeline_mode = #tpu.pipeline_mode<synchronous>, transform_indices = @transform_6, window_bounds = array<i64: 128, 128>}, {pipeline_mode = #tpu.pipeline_mode<synchronous>, transform_indices = @transform_7, window_bounds = array<i64: 1, 128>}, {transform_indices = @transform_8, window_bounds = array<i64: 16, 128>}]} {
    %c0 = arith.constant 0 : index
    %c0_0 = arith.constant 0 : index
    %0 = vector.load %arg1[%c0, %c0_0] : memref<16x5xf32, #tpu.memory_space<vmem>>, vector<16x5xf32>
    %c0_1 = arith.constant 0 : index
    %c0_2 = arith.constant 0 : index
    %1 = vector.load %arg2[%c0_1, %c0_2] : memref<5x128xf32, #tpu.memory_space<vmem>>, vector<5x128xf32>
    %cst = arith.constant dense<0.000000e+00> : vector<16x128xf32>
    %2 = tpu.matmul %0, %1, %cst {dimension_numbers = #tpu.dot_dimension_numbers<[1], [0], [0], [1], [0, 0, 1, 1], [], []>} : vector<16x5xf32>, vector<5x128xf32>, vector<16x128xf32> -> vector<16x128xf32>
    %cst_3 = arith.constant 0.000000e+00 : f32
    %3 = vector.broadcast %cst_3 : f32 to vector<16x128xf32>
    %4 = arith.maximumf %2, %3 : vector<16x128xf32>
    %c0_4 = arith.constant 0 : index
    %c0_5 = arith.constant 0 : index
    %5 = vector.load %arg3[%c0_4, %c0_5] : memref<16x1xi32, #tpu.memory_space<vmem>>, vector<16x1xi32>
    %c0_6 = arith.constant 0 : index
    %c0_7 = arith.constant 0 : index
    %6 = vector.load %arg4[%c0_6, %c0_7] : memref<1x128xi32, #tpu.memory_space<vmem>>, vector<1x128xi32>
    %7 = vector.broadcast %5 : vector<16x1xi32> to vector<16x128xi32>
    %8 = vector.broadcast %6 : vector<1x128xi32> to vector<16x128xi32>
    %9 = arith.cmpi eq, %7, %8 : vector<16x128xi32>
    %cst_8 = arith.constant 1.000000e+30 : f32
    %10 = vector.broadcast %cst_8 : f32 to vector<16x128xf32>
    %11 = arith.select %9, %4, %10 : vector<16x128xi1>, vector<16x128xf32>
    %cst_9 = arith.constant 0.000000e+00 : f32
    %12 = vector.broadcast %cst_9 : f32 to vector<16x128xf32>
    %cst_10 = arith.constant 0.000000e+00 : f32
    %13 = vector.broadcast %cst_10 : f32 to vector<16x1xf32>
    %cst_11 = arith.constant dense<0x7F800000> : vector<16xf32>
    %14 = vector.multi_reduction <minimumf>, %11, %cst_11 [1] : vector<16x128xf32> to vector<16xf32>
    %15 = vector.shape_cast %14 : vector<16xf32> to vector<16x1xf32>
    %16 = vector.broadcast %15 : vector<16x1xf32> to vector<16x128xf32>
    %17 = arith.cmpf oeq, %11, %16 : vector<16x128xf32>
    %cst_12 = arith.constant 1.000000e-16 : f32
    %18 = vector.broadcast %cst_12 : f32 to vector<16x1xf32>
    %19 = arith.maximumf %15, %18 : vector<16x1xf32>
    %20 = tpu.reciprocal %19 {approx = true} : vector<16x1xf32> -> vector<16x1xf32>
    %21 = arith.mulf %19, %20 : vector<16x1xf32>
    %cst_13 = arith.constant 2.000000e+00 : f32
    %22 = vector.broadcast %cst_13 : f32 to vector<16x1xf32>
    %23 = arith.subf %22, %21 : vector<16x1xf32>
    %24 = arith.mulf %20, %23 : vector<16x1xf32>
    %25 = vector.shape_cast %24 : vector<16x1xf32> to vector<16x1xf32>
    %26 = vector.broadcast %25 : vector<16x1xf32> to vector<16x128xf32>
    %27 = arith.select %17, %26, %12 : vector<16x128xi1>, vector<16x128xf32>
    %28 = arith.addf %13, %24 : vector<16x1xf32>
    %cst_14 = arith.constant 1.000000e+30 : f32
    %29 = vector.broadcast %cst_14 : f32 to vector<16x128xf32>
    %30 = arith.select %17, %29, %11 : vector<16x128xi1>, vector<16x128xf32>
    %cst_15 = arith.constant dense<0x7F800000> : vector<16xf32>
    %31 = vector.multi_reduction <minimumf>, %30, %cst_15 [1] : vector<16x128xf32> to vector<16xf32>
    %32 = vector.shape_cast %31 : vector<16xf32> to vector<16x1xf32>
    %33 = vector.broadcast %32 : vector<16x1xf32> to vector<16x128xf32>
    %34 = arith.cmpf oeq, %30, %33 : vector<16x128xf32>
    %cst_16 = arith.constant 1.000000e-16 : f32
    %35 = vector.broadcast %cst_16 : f32 to vector<16x1xf32>
    %36 = arith.maximumf %32, %35 : vector<16x1xf32>
    %37 = tpu.reciprocal %36 {approx = true} : vector<16x1xf32> -> vector<16x1xf32>
    %38 = arith.mulf %36, %37 : vector<16x1xf32>
    %cst_17 = arith.constant 2.000000e+00 : f32
    %39 = vector.broadcast %cst_17 : f32 to vector<16x1xf32>
    %40 = arith.subf %39, %38 : vector<16x1xf32>
    %41 = arith.mulf %37, %40 : vector<16x1xf32>
    %42 = vector.shape_cast %41 : vector<16x1xf32> to vector<16x1xf32>
    %43 = vector.broadcast %42 : vector<16x1xf32> to vector<16x128xf32>
    %44 = arith.select %34, %43, %27 : vector<16x128xi1>, vector<16x128xf32>
    %45 = arith.addf %28, %41 : vector<16x1xf32>
    %cst_18 = arith.constant 1.000000e+30 : f32
    %46 = vector.broadcast %cst_18 : f32 to vector<16x128xf32>
    %47 = arith.select %34, %46, %30 : vector<16x128xi1>, vector<16x128xf32>
    %cst_19 = arith.constant dense<0x7F800000> : vector<16xf32>
    %48 = vector.multi_reduction <minimumf>, %47, %cst_19 [1] : vector<16x128xf32> to vector<16xf32>
    %49 = vector.shape_cast %48 : vector<16xf32> to vector<16x1xf32>
    %50 = vector.broadcast %49 : vector<16x1xf32> to vector<16x128xf32>
    %51 = arith.cmpf oeq, %47, %50 : vector<16x128xf32>
    %cst_20 = arith.constant 1.000000e-16 : f32
    %52 = vector.broadcast %cst_20 : f32 to vector<16x1xf32>
    %53 = arith.maximumf %49, %52 : vector<16x1xf32>
    %54 = tpu.reciprocal %53 {approx = true} : vector<16x1xf32> -> vector<16x1xf32>
    %55 = arith.mulf %53, %54 : vector<16x1xf32>
    %cst_21 = arith.constant 2.000000e+00 : f32
    %56 = vector.broadcast %cst_21 : f32 to vector<16x1xf32>
    %57 = arith.subf %56, %55 : vector<16x1xf32>
    %58 = arith.mulf %54, %57 : vector<16x1xf32>
    %59 = vector.shape_cast %58 : vector<16x1xf32> to vector<16x1xf32>
    %60 = vector.broadcast %59 : vector<16x1xf32> to vector<16x128xf32>
    %61 = arith.select %51, %60, %44 : vector<16x128xi1>, vector<16x128xf32>
    %62 = arith.addf %45, %58 : vector<16x1xf32>
    %c0_22 = arith.constant 0 : index
    %c0_23 = arith.constant 0 : index
    %63 = vector.load %arg5[%c0_22, %c0_23] : memref<128x128xf32, #tpu.memory_space<vmem>>, vector<128x128xf32>
    %cst_24 = arith.constant dense<0.000000e+00> : vector<16x128xf32>
    %64 = tpu.matmul %61, %63, %cst_24 {dimension_numbers = #tpu.dot_dimension_numbers<[1], [0], [0], [1], [0, 0, 1, 1], [], []>} : vector<16x128xf32>, vector<128x128xf32>, vector<16x128xf32> -> vector<16x128xf32>
    %65 = tpu.reciprocal %62 {approx = true} : vector<16x1xf32> -> vector<16x1xf32>
    %66 = arith.mulf %62, %65 : vector<16x1xf32>
    %cst_25 = arith.constant 2.000000e+00 : f32
    %67 = vector.broadcast %cst_25 : f32 to vector<16x1xf32>
    %68 = arith.subf %67, %66 : vector<16x1xf32>
    %69 = arith.mulf %65, %68 : vector<16x1xf32>
    %70 = vector.broadcast %69 : vector<16x1xf32> to vector<16x128xf32>
    %71 = arith.mulf %64, %70 : vector<16x128xf32>
    %c0_26 = arith.constant 0 : index
    %c0_27 = arith.constant 0 : index
    %72 = vector.load %arg6[%c0_26, %c0_27] : memref<16x128xf32, #tpu.memory_space<vmem>>, vector<16x128xf32>
    %73 = arith.addf %71, %72 : vector<16x128xf32>
    %cst_28 = arith.constant 0.000000e+00 : f32
    %74 = vector.broadcast %cst_28 : f32 to vector<16x128xf32>
    %75 = arith.maximumf %73, %74 : vector<16x128xf32>
    %c0_29 = arith.constant 0 : index
    %c0_30 = arith.constant 0 : index
    %76 = vector.load %arg7[%c0_29, %c0_30] : memref<128x128xf32, #tpu.memory_space<vmem>>, vector<128x128xf32>
    %cst_31 = arith.constant dense<0.000000e+00> : vector<16x128xf32>
    %77 = tpu.matmul %75, %76, %cst_31 {dimension_numbers = #tpu.dot_dimension_numbers<[1], [0], [0], [1], [0, 0, 1, 1], [], []>} : vector<16x128xf32>, vector<128x128xf32>, vector<16x128xf32> -> vector<16x128xf32>
    %c0_32 = arith.constant 0 : index
    %c0_33 = arith.constant 0 : index
    %78 = vector.load %arg8[%c0_32, %c0_33] : memref<1x128xf32, #tpu.memory_space<vmem>>, vector<1x128xf32>
    %79 = vector.broadcast %78 : vector<1x128xf32> to vector<16x128xf32>
    %80 = arith.addf %77, %79 : vector<16x128xf32>
    %c0_34 = arith.constant 0 : index
    %c0_35 = arith.constant 0 : index
    %81 = vector.load %arg9[%c0_34, %c0_35] : memref<16x128xf32, #tpu.memory_space<vmem>>, vector<16x128xf32>
    tpu.vector_store %arg9[%c0_34, %c0_35], %80 {strides = array<i32>} : memref<16x128xf32, #tpu.memory_space<vmem>>, vector<16x128xf32>,
    return
  }
  func.func @transform_0(%arg0: i32) -> (i32, i32) {
    %c0_i32 = arith.constant 0 : i32
    %c0_i32_0 = arith.constant 0 : i32
    return %arg0, %c0_i32 : i32, i32
  }
  func.func @transform_1(%arg0: i32) -> (i32, i32) {
    %c0_i32 = arith.constant 0 : i32
    %c0_i32_0 = arith.constant 0 : i32
    %c0_i32_1 = arith.constant 0 : i32
    return %c0_i32, %c0_i32_0 : i32, i32
  }
  func.func @transform_2(%arg0: i32) -> (i32, i32) {
    %c0_i32 = arith.constant 0 : i32
    %c0_i32_0 = arith.constant 0 : i32
    return %arg0, %c0_i32 : i32, i32
  }
  func.func @transform_3(%arg0: i32) -> (i32, i32) {
    %c0_i32 = arith.constant 0 : i32
    %c0_i32_0 = arith.constant 0 : i32
    %c0_i32_1 = arith.constant 0 : i32
    return %c0_i32, %c0_i32_0 : i32, i32
  }
  func.func @transform_4(%arg0: i32) -> (i32, i32) {
    %c0_i32 = arith.constant 0 : i32
    %c0_i32_0 = arith.constant 0 : i32
    %c0_i32_1 = arith.constant 0 : i32
    return %c0_i32, %c0_i32_0 : i32, i32
  }
  func.func @transform_5(%arg0: i32) -> (i32, i32) {
    %c0_i32 = arith.constant 0 : i32
    %c0_i32_0 = arith.constant 0 : i32
    return %arg0, %c0_i32 : i32, i32
  }
  func.func @transform_6(%arg0: i32) -> (i32, i32) {
    %c0_i32 = arith.constant 0 : i32
    %c0_i32_0 = arith.constant 0 : i32
    %c0_i32_1 = arith.constant 0 : i32
    return %c0_i32, %c0_i32_0 : i32, i32
  }
  func.func @transform_7(%arg0: i32) -> (i32, i32) {
    %c0_i32 = arith.constant 0 : i32
    %c0_i32_0 = arith.constant 0 : i32
    %c0_i32_1 = arith.constant 0 : i32
    return %c0_i32, %c0_i32_0 : i32, i32
  }
  func.func @transform_8(%arg0: i32) -> (i32, i32) {
    %c0_i32 = arith.constant 0 : i32
    %c0_i32_0 = arith.constant 0 : i32
    return %arg0, %c0_i32 : i32, i32
  }
}

</mosaic_0001>

<llo_original>
// kernel: tpu_custom_call.1
$region0: #{tpu_custom_call.1}
  #allocation0 [shape = 'u32[]', space=smem, size = 0x4, offset = 0x4, fixed_abs, tag = 'smem constant byte address 0x4 - core index']
  #allocation1 [shape = 'u32[144,128]{1,0:T(1,128)}', space=vmem, size = 0x12000, scoped, tag = 'internal scratch']
  %s0 = inlined_call_operand.vmem [shape: f32[32,5], index: 0, kind: input, shape index: {}]
  %s1 = inlined_call_operand.vmem [shape: f32[5,128], index: 1, kind: input, shape index: {}]
  %s2 = inlined_call_operand.vmem [shape: s32[32,1], index: 2, kind: input, shape index: {}]
  %s3 = inlined_call_operand.vmem [shape: s32[1,128], index: 3, kind: input, shape index: {}]
  %s4 = inlined_call_operand.hbm [shape: f32[128,128], index: 4, kind: input, shape index: {}]
  %s5 = inlined_call_operand.vmem [shape: f32[32,128], index: 5, kind: input, shape index: {}]
  %s6 = inlined_call_operand.hbm [shape: f32[128,128], index: 6, kind: input, shape index: {}]
  %s7 = inlined_call_operand.vmem [shape: f32[1,128], index: 7, kind: input, shape index: {}]
  %s8 = inlined_call_operand.hbm [shape: f32[32,128], index: 8, kind: output, shape index: {}]
  %s9 = sld [smem:[#allocation0]]
  $region73: #{tpu_custom_call.1} parent=0
    _
  %s11 = ssub.s32 1, %s9
  %s12 = scalar_select 0, %s11, %s9
  $region1: #{tpu_custom_call.1} parent=0
    #allocation2 [shape = 'u8[65536]{0}', space=vmem, size = 0x10000, scoped, tag = 'input window, operand 4, single buffered']
    #allocation3 [shape = 's32[2]{0}', space=sflag, size = 0x8, scoped, tag = 'scoped memory for tpu_custom_call.1']
    #allocation4 [shape = 's32[2]{0}', space=sflag, size = 0x8, scoped, tag = 'scoped memory for tpu_custom_call.1']
    #allocation5 [shape = 'u8[65536]{0}', space=vmem, size = 0x10000, scoped, tag = 'input window, operand 6, single buffered']
    #allocation6 [shape = 's32[1]{0}', space=sflag, size = 0x4, scoped, tag = 'scoped memory for tpu_custom_call.1']
    #allocation7 [shape = 'u8[16384]{0}', space=vmem, size = 0x4000, scoped, tag = 'output window, operand 0']
    %13 = vsyncpa [#allocation3], 0
    %14 = vsyncpa [#allocation6], 0
    %15 = vsyncpa [#allocation4], 0
    %s16 = scalar_lea.sflag [#allocation4], 1
    %17 = vsyncpa %s16, 0
    loop: start=0, step=1, limit=4
    $region2: #{tpu_custom_call.1} parent=1 // loop_pre_header
      _
    $region3: #{tpu_custom_call.1} parent=1 // loop_header
      %s19 = sphi 0, %s23
      %p20 = scmp.ge.s32.totalorder %s19, 4
      %s29 = sphi 0, %s31
      %s32 = sphi 0, %s29
      %s33 = sphi 0, %s32
      %s49 = sphi 0, %s33
      %s53 = sphi 0, %s53
      %s55 = sphi 0, %s53
      %s56 = sphi 0, %s55
      %s70 = sphi 0, %s56
      %s76 = sphi 0, %s78
      %s79 = sphi 0, %s76
      %s80 = sphi 0, %s79
      %s96 = sphi 0, %s80
      %s100 = sphi 0, %s100
      %s102 = sphi 0, %s100
      %s103 = sphi 0, %s102
      %s117 = sphi 0, %s103
      %s121 = sphi 0, %s121
      %s123 = sphi 0, %s121
      %s124 = sphi 0, %s123
      %s138 = sphi 0, %s124
      %s144 = sphi 0, %s146
      %s147 = sphi 0, %s144
      %s148 = sphi 0, %s147
      %s164 = sphi 0, %s148
      %s168 = sphi 0, %s168
      %s170 = sphi 0, %s168
      %s171 = sphi 0, %s170
      %s185 = sphi 0, %s171
      %s189 = sphi 0, %s189
      %s191 = sphi 0, %s189
      %s192 = sphi 0, %s191
      %s206 = sphi 0, %s192
      %s212 = sphi 0, %s214
      %s215 = sphi 0, %s212
      %s216 = sphi 0, %s215
      %s232 = sphi 0, %s216
    $region4: #{tpu_custom_call.1} parent=1 // loop_header_branch
      %22 = sbr.rel (%p20) target = $region8
    $region5: #{tpu_custom_call.1} parent=1 // loop_body
      %s24 = ssub.s32 %s19, 1
      %s25 = ssub.s32 %s19, 2
      %s26 = sadd.s32 %s19, 1
      %s27 = ssub.s32 %s19, %s26
      %p28 = scmp.eq.s32.totalorder %s27, 0
      %s30 = sadd.s32 %s29, 1
      %s31 = scalar_select %p28, %s29, %s30
      %p34 = pneg %p28
      %p35 = scmp.eq.s32.totalorder %s19, 1
      %p36 = por %p34, %p35
      %p37 = scmp.ne.s32.totalorder %s29, %s32
      %p38 = scmp.eq.s32.totalorder %s19, 0
      %p39 = por %p37, %p38
      %p40 = scmp.ne.s32.totalorder %s29, %s32
      %p41 = scmp.eq.s32.totalorder %s24, 1
      %p42 = por %p40, %p41
      %p43 = scmp.ne.s32.totalorder %s32, %s33
      %p44 = scmp.eq.s32.totalorder %s24, 0
      %p45 = por %p43, %p44
      %p46 = scmp.ne.s32.totalorder %s32, %s33
      %p47 = scmp.eq.s32.totalorder %s25, 1
      %p48 = por %p46, %p47
      %p50 = scmp.ne.s32.totalorder %s33, %s49
      %p51 = scmp.eq.s32.totalorder %s25, 0
      %p52 = por %p50, %p51
      %s54 = sadd.s32 %s53, 1
      %p57 = scmp.eq.s32.totalorder %s19, 1
      %p58 = scmp.ne.s32.totalorder %s53, %s55
      %p59 = scmp.eq.s32.totalorder %s19, 0
      %p60 = por %p58, %p59
      %p61 = scmp.ne.s32.totalorder %s53, %s55
      %p62 = scmp.eq.s32.totalorder %s24, 1
      %p63 = por %p61, %p62
      %p64 = scmp.ne.s32.totalorder %s55, %s56
      %p65 = scmp.eq.s32.totalorder %s24, 0
      %p66 = por %p64, %p65
      %p67 = scmp.ne.s32.totalorder %s55, %s56
      %p68 = scmp.eq.s32.totalorder %s25, 1
      %p69 = por %p67, %p68
      %p71 = scmp.ne.s32.totalorder %s56, %s70
      %p72 = scmp.eq.s32.totalorder %s25, 0
      %p73 = por %p71, %p72
      %s74 = ssub.s32 %s19, %s26
      %p75 = scmp.eq.s32.totalorder %s74, 0
      %s77 = sadd.s32 %s76, 1
      %s78 = scalar_select %p75, %s76, %s77
      %p81 = pneg %p75
      %p82 = scmp.eq.s32.totalorder %s19, 1
      %p83 = por %p81, %p82
      %p84 = scmp.ne.s32.totalorder %s76, %s79
      %p85 = scmp.eq.s32.totalorder %s19, 0
      %p86 = por %p84, %p85
      %p87 = scmp.ne.s32.totalorder %s76, %s79
      %p88 = scmp.eq.s32.totalorder %s24, 1
      %p89 = por %p87, %p88
      %p90 = scmp.ne.s32.totalorder %s79, %s80
      %p91 = scmp.eq.s32.totalorder %s24, 0
      %p92 = por %p90, %p91
      %p93 = scmp.ne.s32.totalorder %s79, %s80
      %p94 = scmp.eq.s32.totalorder %s25, 1
      %p95 = por %p93, %p94
      %p97 = scmp.ne.s32.totalorder %s80, %s96
      %p98 = scmp.eq.s32.totalorder %s25, 0
      %p99 = por %p97, %p98
      %s101 = sadd.s32 %s100, 1
      %p104 = scmp.eq.s32.totalorder %s19, 1
      %p105 = scmp.ne.s32.totalorder %s100, %s102
      %p106 = scmp.eq.s32.totalorder %s19, 0
      %p107 = por %p105, %p106
      %p108 = scmp.ne.s32.totalorder %s100, %s102
      %p109 = scmp.eq.s32.totalorder %s24, 1
      %p110 = por %p108, %p109
      %p111 = scmp.ne.s32.totalorder %s102, %s103
      %p112 = scmp.eq.s32.totalorder %s24, 0
      %p113 = por %p111, %p112
      %p114 = scmp.ne.s32.totalorder %s102, %s103
      %p115 = scmp.eq.s32.totalorder %s25, 1
      %p116 = por %p114, %p115
      %p118 = scmp.ne.s32.totalorder %s103, %s117
      %p119 = scmp.eq.s32.totalorder %s25, 0
      %p120 = por %p118, %p119
      %s122 = sadd.s32 %s121, 1
      %p125 = scmp.eq.s32.totalorder %s19, 1
      %p126 = scmp.ne.s32.totalorder %s121, %s123
      %p127 = scmp.eq.s32.totalorder %s19, 0
      %p128 = por %p126, %p127
      %p129 = scmp.ne.s32.totalorder %s121, %s123
      %p130 = scmp.eq.s32.totalorder %s24, 1
      %p131 = por %p129, %p130
      %p132 = scmp.ne.s32.totalorder %s123, %s124
      %p133 = scmp.eq.s32.totalorder %s24, 0
      %p134 = por %p132, %p133
      %p135 = scmp.ne.s32.totalorder %s123, %s124
      %p136 = scmp.eq.s32.totalorder %s25, 1
      %p137 = por %p135, %p136
      %p139 = scmp.ne.s32.totalorder %s124, %s138
      %p140 = scmp.eq.s32.totalorder %s25, 0
      %p141 = por %p139, %p140
      %s142 = ssub.s32 %s19, %s26
      %p143 = scmp.eq.s32.totalorder %s142, 0
      %s145 = sadd.s32 %s144, 1
      %s146 = scalar_select %p143, %s144, %s145
      %p149 = pneg %p143
      %p150 = scmp.eq.s32.totalorder %s19, 1
      %p151 = por %p149, %p150
      %p152 = scmp.ne.s32.totalorder %s144, %s147
      %p153 = scmp.eq.s32.totalorder %s19, 0
      %p154 = por %p152, %p153
      %p155 = scmp.ne.s32.totalorder %s144, %s147
      %p156 = scmp.eq.s32.totalorder %s24, 1
      %p157 = por %p155, %p156
      %p158 = scmp.ne.s32.totalorder %s147, %s148
      %p159 = scmp.eq.s32.totalorder %s24, 0
      %p160 = por %p158, %p159
      %p161 = scmp.ne.s32.totalorder %s147, %s148
      %p162 = scmp.eq.s32.totalorder %s25, 1
      %p163 = por %p161, %p162
      %p165 = scmp.ne.s32.totalorder %s148, %s164
      %p166 = scmp.eq.s32.totalorder %s25, 0
      %p167 = por %p165, %p166
      %s169 = sadd.s32 %s168, 1
      %p172 = scmp.eq.s32.totalorder %s19, 1
      %p173 = scmp.ne.s32.totalorder %s168, %s170
      %p174 = scmp.eq.s32.totalorder %s19, 0
      %p175 = por %p173, %p174
      %p176 = scmp.ne.s32.totalorder %s168, %s170
      %p177 = scmp.eq.s32.totalorder %s24, 1
      %p178 = por %p176, %p177
      %p179 = scmp.ne.s32.totalorder %s170, %s171
      %p180 = scmp.eq.s32.totalorder %s24, 0
      %p181 = por %p179, %p180
      %p182 = scmp.ne.s32.totalorder %s170, %s171
      %p183 = scmp.eq.s32.totalorder %s25, 1
      %p184 = por %p182, %p183
      %p186 = scmp.ne.s32.totalorder %s171, %s185
      %p187 = scmp.eq.s32.totalorder %s25, 0
      %p188 = por %p186, %p187
      %s190 = sadd.s32 %s189, 1
      %p193 = scmp.eq.s32.totalorder %s19, 1
      %p194 = scmp.ne.s32.totalorder %s189, %s191
      %p195 = scmp.eq.s32.totalorder %s19, 0
      %p196 = por %p194, %p195
      %p197 = scmp.ne.s32.totalorder %s189, %s191
      %p198 = scmp.eq.s32.totalorder %s24, 1
      %p199 = por %p197, %p198
      %p200 = scmp.ne.s32.totalorder %s191, %s192
      %p201 = scmp.eq.s32.totalorder %s24, 0
      %p202 = por %p200, %p201
      %p203 = scmp.ne.s32.totalorder %s191, %s192
      %p204 = scmp.eq.s32.totalorder %s25, 1
      %p205 = por %p203, %p204
      %p207 = scmp.ne.s32.totalorder %s192, %s206
      %p208 = scmp.eq.s32.totalorder %s25, 0
      %p209 = por %p207, %p208
      %s210 = ssub.s32 %s19, %s26
      %p211 = scmp.eq.s32.totalorder %s210, 0
      %s213 = sadd.s32 %s212, 1
      %s214 = scalar_select %p211, %s212, %s213
      %p217 = pneg %p211
      %p218 = scmp.eq.s32.totalorder %s19, 1
      %p219 = por %p217, %p218
      %p220 = scmp.ne.s32.totalorder %s212, %s215
      %p221 = scmp.eq.s32.totalorder %s19, 0
      %p222 = por %p220, %p221
      %p223 = scmp.ne.s32.totalorder %s212, %s215
      %p224 = scmp.eq.s32.totalorder %s24, 1
      %p225 = por %p223, %p224
      %p226 = scmp.ne.s32.totalorder %s215, %s216
      %p227 = scmp.eq.s32.totalorder %s24, 0
      %p228 = por %p226, %p227
      %p229 = scmp.ne.s32.totalorder %s215, %s216
      %p230 = scmp.eq.s32.totalorder %s25, 1
      %p231 = por %p229, %p230
      %p233 = scmp.ne.s32.totalorder %s216, %s232
      %p234 = scmp.eq.s32.totalorder %s25, 0
      %p235 = por %p233, %p234
      %p236 = scmp.le.s32.totalorder 1, %s19
      %p237 = scmp.lt.s32.totalorder %s19, 3
      %p238 = pnand %p236, %p237
      %p239 = pneg %p238
      // Predicated region
      $region9: #{tpu_custom_call.1} parent=5 // pred_check
        _
      $region10: #{tpu_custom_call.1} parent=5 // pred_check_branch
        %241 = sbr.rel (%p238) target = $region12
      $region11: #{tpu_custom_call.1} parent=5 // pred_region
        %s242 = ssub.s32 %s19, 1
        // Predicated region
        $region13: #{tpu_custom_call.1} parent=11 // pred_check
          %p243 = pneg %p66
        $region14: #{tpu_custom_call.1} parent=11 // pred_check_branch
          %245 = sbr.rel (%p243) target = $region16
        $region15: #{tpu_custom_call.1} parent=11 // pred_region
          _
        $region16: #{tpu_custom_call.1} parent=11 // pred_fallthru
          _
        // Predicated region
        $region17: #{tpu_custom_call.1} parent=11 // pred_check
          %p246 = pneg %p113
        $region18: #{tpu_custom_call.1} parent=11 // pred_check_branch
          %248 = sbr.rel (%p246) target = $region20
        $region19: #{tpu_custom_call.1} parent=11 // pred_region
          _
        $region20: #{tpu_custom_call.1} parent=11 // pred_fallthru
          _
        // Predicated region
        $region21: #{tpu_custom_call.1} parent=11 // pred_check
          %p249 = pneg %p134
        $region22: #{tpu_custom_call.1} parent=11 // pred_check_branch
          %251 = sbr.rel (%p249) target = $region24
        $region23: #{tpu_custom_call.1} parent=11 // pred_region
          %s253 = ssub.s32 2048, 2048
          %254 = vsyncadd [#allocation3], %s253
          %s255 = sshll.u32 [#allocation2], 4
          %s256 = int_to_ptr.vmem [resolvable:$true] %s255
          %261 = dma.hbm_to_vmem [thread:$0]  %s4, 2048, %s256, [#allocation3], 128, 128, 8
        $region24: #{tpu_custom_call.1} parent=11 // pred_fallthru
          _
        // Predicated region
        $region25: #{tpu_custom_call.1} parent=11 // pred_check
          %p262 = pneg %p181
        $region26: #{tpu_custom_call.1} parent=11 // pred_check_branch
          %264 = sbr.rel (%p262) target = $region28
        $region27: #{tpu_custom_call.1} parent=11 // pred_region
          %s266 = ssub.s32 2048, 2048
          %267 = vsyncadd [#allocation6], %s266
          %s268 = sshll.u32 [#allocation5], 4
          %s269 = int_to_ptr.vmem [resolvable:$true] %s268
          %274 = dma.hbm_to_vmem [thread:$0]  %s6, 2048, %s269, [#allocation6], 128, 128, 8
        $region28: #{tpu_custom_call.1} parent=11 // pred_fallthru
          _
        // Predicated region
        $region29: #{tpu_custom_call.1} parent=11 // pred_check
          %p275 = pneg %p202
        $region30: #{tpu_custom_call.1} parent=11 // pred_check_branch
          %277 = sbr.rel (%p275) target = $region32
        $region31: #{tpu_custom_call.1} parent=11 // pred_region
          _
        $region32: #{tpu_custom_call.1} parent=11 // pred_fallthru
          _
      $region12: #{tpu_custom_call.1} parent=5 // pred_fallthru
        _
      %p278 = scmp.lt.s32.totalorder %s19, 2
      // Predicated region
      $region33: #{tpu_custom_call.1} parent=5 // pred_check
        %p279 = pneg %p278
      $region34: #{tpu_custom_call.1} parent=5 // pred_check_branch
        %281 = sbr.rel (%p279) target = $region36
      $region35: #{tpu_custom_call.1} parent=5 // pred_region
        // Predicated region
        $region37: #{tpu_custom_call.1} parent=35 // pred_check
          %p282 = pneg %p39
        $region38: #{tpu_custom_call.1} parent=35 // pred_check_branch
          %284 = sbr.rel (%p282) target = $region40
        $region39: #{tpu_custom_call.1} parent=35 // pred_region
          %s285 = smul.u32 2, %s19
          %p286 = scmp.lt.s32.totalorder %s285, 3
          %s287 = scalar_select %p286, %s285, 3
          %s288 = smul.addr %s287, 8
          %s289 = scalar_lea.vmem %s0, %s288
          %s290 = smul.u32 2, %s19
        $region40: #{tpu_custom_call.1} parent=35 // pred_fallthru
          _
        // Predicated region
        $region41: #{tpu_custom_call.1} parent=35 // pred_check
          %p291 = pneg %p86
        $region42: #{tpu_custom_call.1} parent=35 // pred_check_branch
          %293 = sbr.rel (%p291) target = $region44
        $region43: #{tpu_custom_call.1} parent=35 // pred_region
          %s294 = smul.u32 2, %s19
          %p295 = scmp.lt.s32.totalorder %s294, 3
          %s296 = scalar_select %p295, %s294, 3
          %s297 = smul.addr %s296, 8
          %s298 = scalar_lea.vmem %s2, %s297
          %s299 = smul.u32 2, %s19
        $region44: #{tpu_custom_call.1} parent=35 // pred_fallthru
          _
        // Predicated region
        $region45: #{tpu_custom_call.1} parent=35 // pred_check
          %p300 = pneg %p154
        $region46: #{tpu_custom_call.1} parent=35 // pred_check_branch
          %302 = sbr.rel (%p300) target = $region48
        $region47: #{tpu_custom_call.1} parent=35 // pred_region
          %s303 = smul.u32 2, %s19
          %p304 = scmp.lt.s32.totalorder %s303, 3
          %s305 = scalar_select %p304, %s303, 3
          %s306 = smul.addr %s305, 8
          %s307 = scalar_lea.vmem %s5, %s306
          %s308 = smul.u32 2, %s19
        $region48: #{tpu_custom_call.1} parent=35 // pred_fallthru
          _
      $region36: #{tpu_custom_call.1} parent=5 // pred_fallthru
        _
      %p309 = scmp.le.s32.totalorder 1, %s19
      %p310 = scmp.lt.s32.totalorder %s19, 3
      %p311 = pnand %p309, %p310
      %p312 = pneg %p311
      // Predicated region
      $region49: #{tpu_custom_call.1} parent=5 // pred_check
        _
      $region50: #{tpu_custom_call.1} parent=5 // pred_check_branch
        %314 = sbr.rel (%p311) target = $region52
      $region51: #{tpu_custom_call.1} parent=5 // pred_region
        %s315 = ssub.s32 %s19, 1
        // Predicated region
        $region53: #{tpu_custom_call.1} parent=51 // pred_check
          %p316 = pneg %p134
        $region54: #{tpu_custom_call.1} parent=51 // pred_check_branch
          %318 = sbr.rel (%p316) target = $region56
        $region55: #{tpu_custom_call.1} parent=51 // pred_region
          %319 = dma.done [#allocation3], 2048
        $region56: #{tpu_custom_call.1} parent=51 // pred_fallthru
          _
        // Predicated region
        $region57: #{tpu_custom_call.1} parent=51 // pred_check
          %p320 = pneg %p181
        $region58: #{tpu_custom_call.1} parent=51 // pred_check_branch
          %322 = sbr.rel (%p320) target = $region60
        $region59: #{tpu_custom_call.1} parent=51 // pred_region
          %323 = dma.done [#allocation6], 2048
        $region60: #{tpu_custom_call.1} parent=51 // pred_fallthru
          _
        %s324 = smul.u32 2, %s24
        %p325 = scmp.lt.s32.totalorder %s324, 3
        %s326 = scalar_select %p325, %s324, 3
        %s327 = smul.addr %s326, 8
        %s328 = scalar_lea.vmem %s0, %s327
        %p329 = pneg %p45
        %p330 = pneg %p42
        %p331 = pneg %p66
        %p332 = pneg %p63
        %s333 = smul.u32 2, %s24
        %p334 = scmp.lt.s32.totalorder %s333, 3
        %s335 = scalar_select %p334, %s333, 3
        %s336 = smul.addr %s335, 8
        %s337 = scalar_lea.vmem %s2, %s336
        %p338 = pneg %p92
        %p339 = pneg %p89
        %p340 = pneg %p113
        %p341 = pneg %p110
        %p342 = pneg %p134
        %p343 = pneg %p131
        %s344 = smul.u32 2, %s24
        %p345 = scmp.lt.s32.totalorder %s344, 3
        %s346 = scalar_select %p345, %s344, 3
        %s347 = smul.addr %s346, 8
        %s348 = scalar_lea.vmem %s5, %s347
        %p349 = pneg %p160
        %p350 = pneg %p157
        %p351 = pneg %p181
        %p352 = pneg %p178
        %p353 = pneg %p202
        %p354 = pneg %p199
        %p355 = pneg %p228
        %p356 = pneg %p225
        %s357 = sand.u32 %s215, 1
        %s358 = scalar_lea.sflag [#allocation4], %s357
        %s359 = sand.u32 %s215, 1
        %s360 = smul.addr %s359, 16
        %s361 = scalar_lea.vmem [#allocation7], %s360
        %s362 = smul.u32 2, %s24
        %p363 = scmp.lt.s32.totalorder %s362, 3
        %s364 = scalar_select %p363, %s362, 3
        %s365 = smul.addr %s364, 8
        %s366 = scalar_lea.vmem %s0, %s365
        %s367 = smul.u32 2, %s24
        %s368 = smul.u32 2, %s24
        %p369 = scmp.lt.s32.totalorder %s368, 3
        %s370 = scalar_select %p369, %s368, 3
        %s371 = smul.addr %s370, 8
        %s372 = scalar_lea.vmem %s2, %s371
        %s373 = smul.u32 2, %s24
        %s374 = smul.u32 2, %s24
        %p375 = scmp.lt.s32.totalorder %s374, 3
        %s376 = scalar_select %p375, %s374, 3
        %s377 = smul.addr %s376, 8
        %s378 = scalar_lea.vmem %s5, %s377
        %s379 = smul.u32 2, %s24
        %s380 = smul.u32 2, %s24
        %v381 = vld [vmem:[%s366] sm:$0xff]
        %v382 = vld [vmem:[%s366 + $0x8] sm:$0xff]
        %v383 = vld [vmem:[%s1] sm:$0x1f]
        %vm384 = vcmask 39936
        %v386 = vsel %vm384, %v381, 0
        %v389 = vsel %vm384, %v382, 0
        %vm391 = vcmask 1044480
        %v393 = vsel %vm391, %v383, 0
        %395 = vmatprep.subr.mxu0 0.0
        %396 = vmatpush1.msra.mxu0 %v393
        %397 = vmatprep.subr.mxu0 0.0
        %398 = vmatpush1.msra.mxu0 0.0
        %399 = vmatprep.subr.mxu0 0.0
        %400 = vmatpush1.msra.mxu0 0.0
        %401 = vmatprep.subr.mxu0 0.0
        %402 = vmatpush1.msra.mxu0 0.0
        %403 = vmatprep.subr.mxu0 0.0
        %404 = vmatpush1.msra.mxu0 0.0
        %405 = vmatprep.subr.mxu0 0.0
        %406 = vmatpush1.msra.mxu0 0.0
        %407 = vmatprep.subr.mxu0 0.0
        %408 = vmatpush1.msra.mxu0 0.0
        %409 = vmatprep.subr.mxu0 0.0
        %410 = vmatpush1.msra.mxu0 0.0
        %411 = vmatprep.subr.mxu0 0.0
        %412 = vmatpush1.msra.mxu0 0.0
        %413 = vmatprep.subr.mxu0 0.0
        %414 = vmatpush1.msra.mxu0 0.0
        %415 = vmatprep.subr.mxu0 0.0
        %416 = vmatpush1.msra.mxu0 0.0
        %417 = vmatprep.subr.mxu0 0.0
        %418 = vmatpush1.msra.mxu0 0.0
        %419 = vmatprep.subr.mxu0 0.0
        %420 = vmatpush1.msra.mxu0 0.0
        %421 = vmatprep.subr.mxu0 0.0
        %422 = vmatpush1.msra.mxu0 0.0
        %423 = vmatprep.subr.mxu0 0.0
        %424 = vmatpush1.msra.mxu0 0.0
        %425 = vmatprep.subr.mxu0 0.0
        %426 = vmatpush1.msra.mxu0 0.0
        %427 = vmatprep.subr.mxu0 0.0
        %428 = vmatpush1.msra.mxu0 0.0
        %429 = vmatprep.subr.mxu0 0.0
        %430 = vmatpush1.msra.mxu0 0.0
        %431 = vmatprep.subr.mxu0 0.0
        %432 = vmatpush1.msra.mxu0 0.0
        %433 = vmatprep.subr.mxu0 0.0
        %434 = vmatpush1.msra.mxu0 0.0
        %435 = vmatprep.subr.mxu0 0.0
        %436 = vmatpush1.msra.mxu0 0.0
        %437 = vmatprep.subr.mxu0 0.0
        %438 = vmatpush1.msra.mxu0 0.0
        %439 = vmatprep.subr.mxu0 0.0
        %440 = vmatpush1.msra.mxu0 0.0
        %441 = vmatprep.subr.mxu0 0.0
        %442 = vmatpush1.msra.mxu0 0.0
        %443 = vmatprep.subr.mxu0 0.0
        %444 = vmatpush1.msra.mxu0 0.0
        %445 = vmatprep.subr.mxu0 0.0
        %446 = vmatpush1.msra.mxu0 0.0
        %447 = vmatprep.subr.mxu0 0.0
        %448 = vmatpush1.msra.mxu0 0.0
        %449 = vmatprep.subr.mxu0 0.0
        %450 = vmatpush1.msra.mxu0 0.0
        %451 = vmatprep.subr.mxu0 0.0
        %452 = vmatpush1.msra.mxu0 0.0
        %453 = vmatprep.subr.mxu0 0.0
        %454 = vmatpush1.msra.mxu0 0.0
        %455 = vmatprep.subr.mxu0 0.0
        %456 = vmatpush1.msra.mxu0 0.0
        %457 = vmatprep.subr.mxu0 0.0
        %458 = vmatpush1.msra.mxu0 0.0
        %459 = vmatprep.mubr.f32.mxu0 0.0
        %460 = vmatmul.mubr.f32.gmra.mrb[0].mxu0 %v386
        %v461 = vpop.f32.mrb[0].mxu0
        %v462 = vadd.f32 0.0, %v461
        %v463 = vpop.f32.mrb[0].mxu0
        %464 = vmatprep.mubr.f32.mxu0 0.0
        %465 = vmatmul.mubr.f32.gmra.mrb[0].mxu0 %v389
        %v466 = vpop.f32.mrb[0].mxu0
        %v467 = vadd.f32 0.0, %v466
        %v468 = vpop.f32.mrb[0].mxu0
        %469 = vdwg.mxu0
        %v470 = vmax.f32 %v462, 0.0
        %v471 = vmax.f32 %v467, 0.0
        %v472 = vld [vmem:[%s372] sm:$0xff]
        %v473 = vld [vmem:[%s372 + $0x8] sm:$0xff]
        %v474 = vld [vmem:[%s3] sm:$0x1]
        %475 = vset.pattern.permute.xlu0 0
        %476 = vperm.xlu0 %475, %v472
        %v477 = vpop.permute.xlu0 %476
        %478 = vset.pattern.permute.xlu0 0
        %479 = vperm.xlu0 %478, %v473
        %v480 = vpop.permute.xlu0 %479
        %v481 = vlaneseq
        %v482 = vshrl.u32 %v481, 7
        %v483 = vsub.s32 0, %v482
        %v484 = vrot.slane %v474, %v483
        %vm485 = vcmp.eq.s32.totalorder %v477, %v484
        %vm486 = vcmp.eq.s32.totalorder %v480, %v484
        %v487 = vsel %vm485, %v470, 1e+30
        %v488 = vsel %vm486, %v471, 1e+30
        %489 = vmin.xlane.f32.xlu0 %v487
        %v490 = vpop.xlane.xlu0 %489
        %491 = vmin.xlane.f32.xlu0 %v488
        %v492 = vpop.xlane.xlu0 %491
        %vm493 = vcmp.eq.f32.partialorder %v487, %v490
        %vm494 = vcmp.eq.f32.partialorder %v488, %v492
        %v495 = vmax.f32 %v490, 1e-16
        %v496 = vmax.f32 %v492, 1e-16
        %v497 = vrcp.pop %v495
        %v498 = vrcp.pop %v496
        %v499 = vmul.f32 %v495, %v497
        %v500 = vmul.f32 %v496, %v498
        %v501 = vsub.f32 2.0, %v499
        %v502 = vsub.f32 2.0, %v500
        %v503 = vmul.f32 %v497, %v501
        %v504 = vmul.f32 %v498, %v502
        %v505 = vsel %vm493, %v503, 0.0
        %v506 = vsel %vm494, %v504, 0.0
        %v507 = vadd.f32 %v503, 0.0
        %v508 = vadd.f32 %v504, 0.0
        %v509 = vsel %vm493, 1e+30, %v487
        %v510 = vsel %vm494, 1e+30, %v488
        %511 = vmin.xlane.f32.xlu0 %v509
        %v512 = vpop.xlane.xlu0 %511
        %513 = vmin.xlane.f32.xlu0 %v510
        %v514 = vpop.xlane.xlu0 %513
        %vm515 = vcmp.eq.f32.partialorder %v509, %v512
        %vm516 = vcmp.eq.f32.partialorder %v510, %v514
        %v517 = vmax.f32 %v512, 1e-16
        %v518 = vmax.f32 %v514, 1e-16
        %v519 = vrcp.pop %v517
        %v520 = vrcp.pop %v518
        %v521 = vmul.f32 %v517, %v519
        %v522 = vmul.f32 %v518, %v520
        %v523 = vsub.f32 2.0, %v521
        %v524 = vsub.f32 2.0, %v522
        %v525 = vmul.f32 %v519, %v523
        %v526 = vmul.f32 %v520, %v524
        %v527 = vsel %vm515, %v525, %v505
        %v528 = vsel %vm516, %v526, %v506
        %v529 = vadd.f32 %v507, %v525
        %v530 = vadd.f32 %v508, %v526
        %v531 = vsel %vm515, 1e+30, %v509
        %v532 = vsel %vm516, 1e+30, %v510
        %533 = vmin.xlane.f32.xlu0 %v531
        %v534 = vpop.xlane.xlu0 %533
        %535 = vmin.xlane.f32.xlu0 %v532
        %v536 = vpop.xlane.xlu0 %535
        %vm537 = vcmp.eq.f32.partialorder %v531, %v534
        %vm538 = vcmp.eq.f32.partialorder %v532, %v536
        %v539 = vmax.f32 %v534, 1e-16
        %v540 = vmax.f32 %v536, 1e-16
        %v541 = vrcp.pop %v539
        %v542 = vrcp.pop %v540
        %v543 = vmul.f32 %v539, %v541
        %v544 = vmul.f32 %v540, %v542
        %v545 = vsub.f32 2.0, %v543
        %v546 = vsub.f32 2.0, %v544
        %v547 = vmul.f32 %v541, %v545
        %v548 = vmul.f32 %v542, %v546
        %v549 = vsel %vm537, %v547, %v527
        %v550 = vsel %vm538, %v548, %v528
        %v551 = vadd.f32 %v529, %v547
        %v552 = vadd.f32 %v530, %v548
        %v553 = vld [vmem:[#allocation2] sm:$0xff]
        %v554 = vld [vmem:[#allocation2 + $0x8] sm:$0xff]
        %v555 = vld [vmem:[#allocation2 + $0x10] sm:$0xff]
        %v556 = vld [vmem:[#allocation2 + $0x18] sm:$0xff]
        %v557 = vld [vmem:[#allocation2 + $0x20] sm:$0xff]
        %v558 = vld [vmem:[#allocation2 + $0x28] sm:$0xff]
        %v559 = vld [vmem:[#allocation2 + $0x30] sm:$0xff]
        %v560 = vld [vmem:[#allocation2 + $0x38] sm:$0xff]
        %v561 = vld [vmem:[#allocation2 + $0x40] sm:$0xff]
        %v562 = vld [vmem:[#allocation2 + $0x48] sm:$0xff]
        %v563 = vld [vmem:[#allocation2 + $0x50] sm:$0xff]
        %v564 = vld [vmem:[#allocation2 + $0x58] sm:$0xff]
        %v565 = vld [vmem:[#allocation2 + $0x60] sm:$0xff]
        %v566 = vld [vmem:[#allocation2 + $0x68] sm:$0xff]
        %v567 = vld [vmem:[#allocation2 + $0x70] sm:$0xff]
        %v568 = vld [vmem:[#allocation2 + $0x78] sm:$0xff]
        %569 = vmatprep.subr.mxu0 0.0
        %570 = vmatpush1.msra.mxu0 %v553
        %571 = vmatprep.subr.mxu0 0.0
        %572 = vmatpush1.msra.mxu0 %v554
        %573 = vmatprep.subr.mxu0 0.0
        %574 = vmatpush1.msra.mxu0 %v555
        %575 = vmatprep.subr.mxu0 0.0
        %576 = vmatpush1.msra.mxu0 %v556
        %577 = vmatprep.subr.mxu0 0.0
        %578 = vmatpush1.msra.mxu0 %v557
        %579 = vmatprep.subr.mxu0 0.0
        %580 = vmatpush1.msra.mxu0 %v558
        %581 = vmatprep.subr.mxu0 0.0
        %582 = vmatpush1.msra.mxu0 %v559
        %583 = vmatprep.subr.mxu0 0.0
        %584 = vmatpush1.msra.mxu0 %v560
        %585 = vmatprep.subr.mxu0 0.0
        %586 = vmatpush1.msra.mxu0 %v561
        %587 = vmatprep.subr.mxu0 0.0
        %588 = vmatpush1.msra.mxu0 %v562
        %589 = vmatprep.subr.mxu0 0.0
        %590 = vmatpush1.msra.mxu0 %v563
        %591 = vmatprep.subr.mxu0 0.0
        %592 = vmatpush1.msra.mxu0 %v564
        %593 = vmatprep.subr.mxu0 0.0
        %594 = vmatpush1.msra.mxu0 %v565
        %595 = vmatprep.subr.mxu0 0.0
        %596 = vmatpush1.msra.mxu0 %v566
        %597 = vmatprep.subr.mxu0 0.0
        %598 = vmatpush1.msra.mxu0 %v567
        %599 = vmatprep.subr.mxu0 0.0
        %600 = vmatpush1.msra.mxu0 %v568
        %601 = vmatprep.subr.mxu0 0.0
        %602 = vmatpush1.msra.mxu0 0.0
        %603 = vmatprep.subr.mxu0 0.0
        %604 = vmatpush1.msra.mxu0 0.0
        %605 = vmatprep.subr.mxu0 0.0
        %606 = vmatpush1.msra.mxu0 0.0
        %607 = vmatprep.subr.mxu0 0.0
        %608 = vmatpush1.msra.mxu0 0.0
        %609 = vmatprep.subr.mxu0 0.0
        %610 = vmatpush1.msra.mxu0 0.0
        %611 = vmatprep.subr.mxu0 0.0
        %612 = vmatpush1.msra.mxu0 0.0
        %613 = vmatprep.subr.mxu0 0.0
        %614 = vmatpush1.msra.mxu0 0.0
        %615 = vmatprep.subr.mxu0 0.0
        %616 = vmatpush1.msra.mxu0 0.0
        %617 = vmatprep.subr.mxu0 0.0
        %618 = vmatpush1.msra.mxu0 0.0
        %619 = vmatprep.subr.mxu0 0.0
        %620 = vmatpush1.msra.mxu0 0.0
        %621 = vmatprep.subr.mxu0 0.0
        %622 = vmatpush1.msra.mxu0 0.0
        %623 = vmatprep.subr.mxu0 0.0
        %624 = vmatpush1.msra.mxu0 0.0
        %625 = vmatprep.subr.mxu0 0.0
        %626 = vmatpush1.msra.mxu0 0.0
        %627 = vmatprep.subr.mxu0 0.0
        %628 = vmatpush1.msra.mxu0 0.0
        %629 = vmatprep.subr.mxu0 0.0
        %630 = vmatpush1.msra.mxu0 0.0
        %631 = vmatprep.subr.mxu0 0.0
        %632 = vmatpush1.msra.mxu0 0.0
        %633 = vmatprep.mubr.f32.mxu0 0.0
        %634 = vmatmul.mubr.f32.gmra.mrb[0].mxu0 %v549
        %v635 = vpop.f32.mrb[0].mxu0
        %v636 = vadd.f32 0.0, %v635
        %v637 = vpop.f32.mrb[0].mxu0
        %638 = vmatprep.mubr.f32.mxu0 0.0
        %639 = vmatmul.mubr.f32.gmra.mrb[0].mxu0 %v550
        %v640 = vpop.f32.mrb[0].mxu0
        %v641 = vadd.f32 0.0, %v640
        %v642 = vpop.f32.mrb[0].mxu0
        %643 = vdwg.mxu0
        %v644 = vrcp.pop %v551
        %v645 = vrcp.pop %v552
        %v646 = vmul.f32 %v551, %v644
        %v647 = vmul.f32 %v552, %v645
        %v648 = vsub.f32 2.0, %v646
        %v649 = vsub.f32 2.0, %v647
        %v650 = vmul.f32 %v644, %v648
        %v651 = vmul.f32 %v645, %v649
        %v652 = vmul.f32 %v636, %v650
        %v653 = vmul.f32 %v641, %v651
        %v654 = vld [vmem:[%s378] sm:$0xff]
        %v655 = vld [vmem:[%s378 + $0x8] sm:$0xff]
        %v656 = vadd.f32 %v652, %v654
        %v657 = vadd.f32 %v653, %v655
        %v658 = vmax.f32 %v656, 0.0
        %v659 = vmax.f32 %v657, 0.0
        %v660 = vld [vmem:[#allocation5] sm:$0xff]
        %v661 = vld [vmem:[#allocation5 + $0x8] sm:$0xff]
        %v662 = vld [vmem:[#allocation5 + $0x10] sm:$0xff]
        %v663 = vld [vmem:[#allocation5 + $0x18] sm:$0xff]
        %v664 = vld [vmem:[#allocation5 + $0x20] sm:$0xff]
        %v665 = vld [vmem:[#allocation5 + $0x28] sm:$0xff]
        %v666 = vld [vmem:[#allocation5 + $0x30] sm:$0xff]
        %v667 = vld [vmem:[#allocation5 + $0x38] sm:$0xff]
        %v668 = vld [vmem:[#allocation5 + $0x40] sm:$0xff]
        %v669 = vld [vmem:[#allocation5 + $0x48] sm:$0xff]
        %v670 = vld [vmem:[#allocation5 + $0x50] sm:$0xff]
        %v671 = vld [vmem:[#allocation5 + $0x58] sm:$0xff]
        %v672 = vld [vmem:[#allocation5 + $0x60] sm:$0xff]
        %v673 = vld [vmem:[#allocation5 + $0x68] sm:$0xff]
        %v674 = vld [vmem:[#allocation5 + $0x70] sm:$0xff]
        %v675 = vld [vmem:[#allocation5 + $0x78] sm:$0xff]
        %v676 = vld [vmem:[%s7] sm:$0x1]
        %v678 = vlaneseq
        %v679 = vshrl.u32 %v678, 7
        %v680 = vsub.s32 0, %v679
        %v681 = vrot.slane %v676, %v680
        %683 = vmatprep.subr.mxu0 0.0
        %684 = vmatpush1.msra.mxu0 %v660
        %685 = vmatprep.subr.mxu0 0.0
        %686 = vmatpush1.msra.mxu0 %v661
        %687 = vmatprep.subr.mxu0 0.0
        %688 = vmatpush1.msra.mxu0 %v662
        %689 = vmatprep.subr.mxu0 0.0
        %690 = vmatpush1.msra.mxu0 %v663
        %691 = vmatprep.subr.mxu0 0.0
        %692 = vmatpush1.msra.mxu0 %v664
        %693 = vmatprep.subr.mxu0 0.0
        %694 = vmatpush1.msra.mxu0 %v665
        %695 = vmatprep.subr.mxu0 0.0
        %696 = vmatpush1.msra.mxu0 %v666
        %697 = vmatprep.subr.mxu0 0.0
        %698 = vmatpush1.msra.mxu0 %v667
        %699 = vmatprep.subr.mxu0 0.0
        %700 = vmatpush1.msra.mxu0 %v668
        %701 = vmatprep.subr.mxu0 0.0
        %702 = vmatpush1.msra.mxu0 %v669
        %703 = vmatprep.subr.mxu0 0.0
        %704 = vmatpush1.msra.mxu0 %v670
        %705 = vmatprep.subr.mxu0 0.0
        %706 = vmatpush1.msra.mxu0 %v671
        %707 = vmatprep.subr.mxu0 0.0
        %708 = vmatpush1.msra.mxu0 %v672
        %709 = vmatprep.subr.mxu0 0.0
        %710 = vmatpush1.msra.mxu0 %v673
        %711 = vmatprep.subr.mxu0 0.0
        %712 = vmatpush1.msra.mxu0 %v674
        %713 = vmatprep.subr.mxu0 0.0
        %714 = vmatpush1.msra.mxu0 %v675
        %715 = vmatprep.subr.mxu0 0.0
        %716 = vmatpush1.msra.mxu0 0.0
        %717 = vmatprep.subr.mxu0 0.0
        %718 = vmatpush1.msra.mxu0 0.0
        %719 = vmatprep.subr.mxu0 0.0
        %720 = vmatpush1.msra.mxu0 0.0
        %721 = vmatprep.subr.mxu0 0.0
        %722 = vmatpush1.msra.mxu0 0.0
        %723 = vmatprep.subr.mxu0 0.0
        %724 = vmatpush1.msra.mxu0 0.0
        %725 = vmatprep.subr.mxu0 0.0
        %726 = vmatpush1.msra.mxu0 0.0
        %727 = vmatprep.subr.mxu0 0.0
        %728 = vmatpush1.msra.mxu0 0.0
        %729 = vmatprep.subr.mxu0 0.0
        %730 = vmatpush1.msra.mxu0 0.0
        %731 = vmatprep.subr.mxu0 0.0
        %732 = vmatpush1.msra.mxu0 0.0
        %733 = vmatprep.subr.mxu0 0.0
        %734 = vmatpush1.msra.mxu0 0.0
        %735 = vmatprep.subr.mxu0 0.0
        %736 = vmatpush1.msra.mxu0 0.0
        %737 = vmatprep.subr.mxu0 0.0
        %738 = vmatpush1.msra.mxu0 0.0
        %739 = vmatprep.subr.mxu0 0.0
        %740 = vmatpush1.msra.mxu0 0.0
        %741 = vmatprep.subr.mxu0 0.0
        %742 = vmatpush1.msra.mxu0 0.0
        %743 = vmatprep.subr.mxu0 0.0
        %744 = vmatpush1.msra.mxu0 0.0
        %745 = vmatprep.subr.mxu0 0.0
        %746 = vmatpush1.msra.mxu0 0.0
        %747 = vmatprep.mubr.f32.mxu0 0.0
        %748 = vmatmul.mubr.f32.gmra.mrb[0].mxu0 %v658
        %v749 = vpop.f32.mrb[0].mxu0
        %v750 = vadd.f32 %v681, %v749
        %v751 = vpop.f32.mrb[0].mxu0
        %752 = vmatprep.mubr.f32.mxu0 0.0
        %753 = vmatmul.mubr.f32.gmra.mrb[0].mxu0 %v659
        %v754 = vpop.f32.mrb[0].mxu0
        %v755 = vadd.f32 %v681, %v754
        %v756 = vpop.f32.mrb[0].mxu0
        %757 = vdwg.mxu0
        %758 = vst [vmem:[%s361] sm:$0xff] %v750
        %759 = vst [vmem:[%s361 + $0x8] sm:$0xff] %v755
        %s760 = sand.u32 %s215, 1
        %s761 = scalar_lea.sflag [#allocation4], %s760
        %s762 = sand.u32 %s215, 1
        %s763 = smul.addr %s762, 16
        %s764 = scalar_lea.vmem [#allocation7], %s763
        // Predicated region
        $region61: #{tpu_custom_call.1} parent=51 // pred_check
          %p765 = pneg %p225
        $region62: #{tpu_custom_call.1} parent=51 // pred_check_branch
          %767 = sbr.rel (%p765) target = $region64
        $region63: #{tpu_custom_call.1} parent=51 // pred_region
          %s768 = smul.u32 2, %s24
          %s770 = ssub.s32 256, 256
          %771 = vsyncadd %s761, %s770
          %s772 = smul.addr %s768, 128
          %s773 = scalar_lea.hbm %s8, %s772
          %s774 = sshll.u32 %s764, 4
          %s775 = int_to_ptr.vmem [resolvable:$true] %s774
          %780 = dma.vmem_to_hbm [thread:$0]  %s775, 256, %s773, %s761, 128, 128, 8
        $region64: #{tpu_custom_call.1} parent=51 // pred_fallthru
          _
      $region52: #{tpu_custom_call.1} parent=5 // pred_fallthru
        _
      %p781 = scmp.le.s32.totalorder 2, %s19
      // Predicated region
      $region65: #{tpu_custom_call.1} parent=5 // pred_check
        %p782 = pneg %p781
      $region66: #{tpu_custom_call.1} parent=5 // pred_check_branch
        %784 = sbr.rel (%p782) target = $region68
      $region67: #{tpu_custom_call.1} parent=5 // pred_region
        %s785 = ssub.s32 %s19, 2
        // Predicated region
        $region69: #{tpu_custom_call.1} parent=67 // pred_check
          %p786 = pneg %p231
        $region70: #{tpu_custom_call.1} parent=67 // pred_check_branch
          %788 = sbr.rel (%p786) target = $region72
        $region71: #{tpu_custom_call.1} parent=67 // pred_region
          %s789 = sand.u32 %s216, 1
          %s790 = scalar_lea.sflag [#allocation4], %s789
          %s791 = sand.u32 %s216, 1
          %s792 = smul.addr %s791, 16
          %s793 = scalar_lea.vmem [#allocation7], %s792
          %794 = dma.done %s790, 256
        $region72: #{tpu_custom_call.1} parent=67 // pred_fallthru
          _
      $region68: #{tpu_custom_call.1} parent=5 // pred_fallthru
        _
    $region6: #{tpu_custom_call.1} parent=1 // loop_footer
      %s23 = sadd.s32 1, %s19
    $region7: #{tpu_custom_call.1} parent=1 // loop_footer_branch
      %18 = sbr.rel target = $region3
    $region8: #{tpu_custom_call.1} parent=1 // loop_exit
      _
    %795 = vsyncpa [#allocation3], 1
    %s796 = scalar_lea.sflag [#allocation3], 1
    %797 = vsyncpa %s796, 1
    %798 = vsyncpa [#allocation6], 1
    %799 = vsyncpa [#allocation4], 1
    %s800 = scalar_lea.sflag [#allocation4], 1
    %801 = vsyncpa %s800, 1

// kernel: tpu_custom_call.1
$region0: #{tpu_custom_call.1}
  #allocation0 [shape = 'u32[]', space=smem, size = 0x4, offset = 0x4, fixed_abs, tag = 'smem constant byte address 0x4 - core index']
  #allocation1 [shape = 'u32[144,128]{1,0:T(1,128)}', space=vmem, size = 0x12000, scoped, tag = 'internal scratch']
  %s0 = inlined_call_operand.vmem [shape: f32[32,5], index: 0, kind: input, shape index: {}]
  %s1 = inlined_call_operand.vmem [shape: f32[5,128], index: 1, kind: input, shape index: {}]
  %s2 = inlined_call_operand.vmem [shape: s32[32,1], index: 2, kind: input, shape index: {}]
  %s3 = inlined_call_operand.vmem [shape: s32[1,128], index: 3, kind: input, shape index: {}]
  %s4 = inlined_call_operand.hbm [shape: f32[128,128], index: 4, kind: input, shape index: {}]
  %s5 = inlined_call_operand.vmem [shape: f32[32,128], index: 5, kind: input, shape index: {}]
  %s6 = inlined_call_operand.hbm [shape: f32[128,128], index: 6, kind: input, shape index: {}]
  %s7 = inlined_call_operand.vmem [shape: f32[1,128], index: 7, kind: input, shape index: {}]
  %s8 = inlined_call_operand.hbm [shape: f32[32,128], index: 8, kind: output, shape index: {}]
  %s9 = sld [smem:[#allocation0]]
  $region73: #{tpu_custom_call.1} parent=0
    _
  %s11 = ssub.s32 1, %s9
  %s12 = scalar_select 0, %s11, %s9
  $region1: #{tpu_custom_call.1} parent=0
    #allocation2 [shape = 'u8[65536]{0}', space=vmem, size = 0x10000, scoped, tag = 'input window, operand 4, single buffered']
    #allocation3 [shape = 's32[2]{0}', space=sflag, size = 0x8, scoped, tag = 'scoped memory for tpu_custom_call.1']
    #allocation4 [shape = 's32[2]{0}', space=sflag, size = 0x8, scoped, tag = 'scoped memory for tpu_custom_call.1']
    #allocation5 [shape = 'u8[65536]{0}', space=vmem, size = 0x10000, scoped, tag = 'input window, operand 6, single buffered']
    #allocation6 [shape = 's32[1]{0}', space=sflag, size = 0x4, scoped, tag = 'scoped memory for tpu_custom_call.1']
    #allocation7 [shape = 'u8[16384]{0}', space=vmem, size = 0x4000, scoped, tag = 'output window, operand 0']
    %13 = vsyncpa [#allocation3], 0
    %14 = vsyncpa [#allocation6], 0
    %15 = vsyncpa [#allocation4], 0
    %s16 = scalar_lea.sflag [#allocation4], 1
    %17 = vsyncpa %s16, 0
    loop: start=0, step=1, limit=4
    $region2: #{tpu_custom_call.1} parent=1 // loop_pre_header
      _
    $region3: #{tpu_custom_call.1} parent=1 // loop_header
      %s19 = sphi 0, %s23
      %p20 = scmp.ge.s32.totalorder %s19, 4
      %s29 = sphi 0, %s31
      %s32 = sphi 0, %s29
      %s33 = sphi 0, %s32
      %s49 = sphi 0, %s33
      %s53 = sphi 0, %s53
      %s55 = sphi 0, %s53
      %s56 = sphi 0, %s55
      %s70 = sphi 0, %s56
      %s76 = sphi 0, %s78
      %s79 = sphi 0, %s76
      %s80 = sphi 0, %s79
      %s96 = sphi 0, %s80
      %s100 = sphi 0, %s100
      %s102 = sphi 0, %s100
      %s103 = sphi 0, %s102
      %s117 = sphi 0, %s103
      %s121 = sphi 0, %s121
      %s123 = sphi 0, %s121
      %s124 = sphi 0, %s123
      %s138 = sphi 0, %s124
      %s144 = sphi 0, %s146
      %s147 = sphi 0, %s144
      %s148 = sphi 0, %s147
      %s164 = sphi 0, %s148
      %s168 = sphi 0, %s168
      %s170 = sphi 0, %s168
      %s171 = sphi 0, %s170
      %s185 = sphi 0, %s171
      %s189 = sphi 0, %s189
      %s191 = sphi 0, %s189
      %s192 = sphi 0, %s191
      %s206 = sphi 0, %s192
      %s212 = sphi 0, %s214
      %s215 = sphi 0, %s212
      %s216 = sphi 0, %s215
      %s232 = sphi 0, %s216
    $region4: #{tpu_custom_call.1} parent=1 // loop_header_branch
      %22 = sbr.rel (%p20) target = $region8
    $region5: #{tpu_custom_call.1} parent=1 // loop_body
      %s24 = ssub.s32 %s19, 1
      %s25 = ssub.s32 %s19, 2
      %s26 = sadd.s32 %s19, 1
      %s27 = ssub.s32 %s19, %s26
      %p28 = scmp.eq.s32.totalorder %s27, 0
      %s30 = sadd.s32 %s29, 1
      %s31 = scalar_select %p28, %s29, %s30
      %p34 = pneg %p28
      %p35 = scmp.eq.s32.totalorder %s19, 1
      %p36 = por %p34, %p35
      %p37 = scmp.ne.s32.totalorder %s29, %s32
      %p38 = scmp.eq.s32.totalorder %s19, 0
      %p39 = por %p37, %p38
      %p40 = scmp.ne.s32.totalorder %s29, %s32
      %p41 = scmp.eq.s32.totalorder %s24, 1
      %p42 = por %p40, %p41
      %p43 = scmp.ne.s32.totalorder %s32, %s33
      %p44 = scmp.eq.s32.totalorder %s24, 0
      %p45 = por %p43, %p44
      %p46 = scmp.ne.s32.totalorder %s32, %s33
      %p47 = scmp.eq.s32.totalorder %s25, 1
      %p48 = por %p46, %p47
      %p50 = scmp.ne.s32.totalorder %s33, %s49
      %p51 = scmp.eq.s32.totalorder %s25, 0
      %p52 = por %p50, %p51
      %s54 = sadd.s32 %s53, 1
      %p57 = scmp.eq.s32.totalorder %s19, 1
      %p58 = scmp.ne.s32.totalorder %s53, %s55
      %p59 = scmp.eq.s32.totalorder %s19, 0
      %p60 = por %p58, %p59
      %p61 = scmp.ne.s32.totalorder %s53, %s55
      %p62 = scmp.eq.s32.totalorder %s24, 1
      %p63 = por %p61, %p62
      %p64 = scmp.ne.s32.totalorder %s55, %s56
      %p65 = scmp.eq.s32.totalorder %s24, 0
      %p66 = por %p64, %p65
      %p67 = scmp.ne.s32.totalorder %s55, %s56
      %p68 = scmp.eq.s32.totalorder %s25, 1
      %p69 = por %p67, %p68
      %p71 = scmp.ne.s32.totalorder %s56, %s70
      %p72 = scmp.eq.s32.totalorder %s25, 0
      %p73 = por %p71, %p72
      %s74 = ssub.s32 %s19, %s26
      %p75 = scmp.eq.s32.totalorder %s74, 0
      %s77 = sadd.s32 %s76, 1
      %s78 = scalar_select %p75, %s76, %s77
      %p81 = pneg %p75
      %p82 = scmp.eq.s32.totalorder %s19, 1
      %p83 = por %p81, %p82
      %p84 = scmp.ne.s32.totalorder %s76, %s79
      %p85 = scmp.eq.s32.totalorder %s19, 0
      %p86 = por %p84, %p85
      %p87 = scmp.ne.s32.totalorder %s76, %s79
      %p88 = scmp.eq.s32.totalorder %s24, 1
      %p89 = por %p87, %p88
      %p90 = scmp.ne.s32.totalorder %s79, %s80
      %p91 = scmp.eq.s32.totalorder %s24, 0
      %p92 = por %p90, %p91
      %p93 = scmp.ne.s32.totalorder %s79, %s80
      %p94 = scmp.eq.s32.totalorder %s25, 1
      %p95 = por %p93, %p94
      %p97 = scmp.ne.s32.totalorder %s80, %s96
      %p98 = scmp.eq.s32.totalorder %s25, 0
      %p99 = por %p97, %p98
      %s101 = sadd.s32 %s100, 1
      %p104 = scmp.eq.s32.totalorder %s19, 1
      %p105 = scmp.ne.s32.totalorder %s100, %s102
      %p106 = scmp.eq.s32.totalorder %s19, 0
      %p107 = por %p105, %p106
      %p108 = scmp.ne.s32.totalorder %s100, %s102
      %p109 = scmp.eq.s32.totalorder %s24, 1
      %p110 = por %p108, %p109
      %p111 = scmp.ne.s32.totalorder %s102, %s103
      %p112 = scmp.eq.s32.totalorder %s24, 0
      %p113 = por %p111, %p112
      %p114 = scmp.ne.s32.totalorder %s102, %s103
      %p115 = scmp.eq.s32.totalorder %s25, 1
      %p116 = por %p114, %p115
      %p118 = scmp.ne.s32.totalorder %s103, %s117
      %p119 = scmp.eq.s32.totalorder %s25, 0
      %p120 = por %p118, %p119
      %s122 = sadd.s32 %s121, 1
      %p125 = scmp.eq.s32.totalorder %s19, 1
      %p126 = scmp.ne.s32.totalorder %s121, %s123
      %p127 = scmp.eq.s32.totalorder %s19, 0
      %p128 = por %p126, %p127
      %p129 = scmp.ne.s32.totalorder %s121, %s123
      %p130 = scmp.eq.s32.totalorder %s24, 1
      %p131 = por %p129, %p130
      %p132 = scmp.ne.s32.totalorder %s123, %s124
      %p133 = scmp.eq.s32.totalorder %s24, 0
      %p134 = por %p132, %p133
      %p135 = scmp.ne.s32.totalorder %s123, %s124
      %p136 = scmp.eq.s32.totalorder %s25, 1
      %p137 = por %p135, %p136
      %p139 = scmp.ne.s32.totalorder %s124, %s138
      %p140 = scmp.eq.s32.totalorder %s25, 0
      %p141 = por %p139, %p140
      %s142 = ssub.s32 %s19, %s26
      %p143 = scmp.eq.s32.totalorder %s142, 0
      %s145 = sadd.s32 %s144, 1
      %s146 = scalar_select %p143, %s144, %s145
      %p149 = pneg %p143
      %p150 = scmp.eq.s32.totalorder %s19, 1
      %p151 = por %p149, %p150
      %p152 = scmp.ne.s32.totalorder %s144, %s147
      %p153 = scmp.eq.s32.totalorder %s19, 0
      %p154 = por %p152, %p153
      %p155 = scmp.ne.s32.totalorder %s144, %s147
      %p156 = scmp.eq.s32.totalorder %s24, 1
      %p157 = por %p155, %p156
      %p158 = scmp.ne.s32.totalorder %s147, %s148
      %p159 = scmp.eq.s32.totalorder %s24, 0
      %p160 = por %p158, %p159
      %p161 = scmp.ne.s32.totalorder %s147, %s148
      %p162 = scmp.eq.s32.totalorder %s25, 1
      %p163 = por %p161, %p162
      %p165 = scmp.ne.s32.totalorder %s148, %s164
      %p166 = scmp.eq.s32.totalorder %s25, 0
      %p167 = por %p165, %p166
      %s169 = sadd.s32 %s168, 1
      %p172 = scmp.eq.s32.totalorder %s19, 1
      %p173 = scmp.ne.s32.totalorder %s168, %s170
      %p174 = scmp.eq.s32.totalorder %s19, 0
      %p175 = por %p173, %p174
      %p176 = scmp.ne.s32.totalorder %s168, %s170
      %p177 = scmp.eq.s32.totalorder %s24, 1
      %p178 = por %p176, %p177
      %p179 = scmp.ne.s32.totalorder %s170, %s171
      %p180 = scmp.eq.s32.totalorder %s24, 0
      %p181 = por %p179, %p180
      %p182 = scmp.ne.s32.totalorder %s170, %s171
      %p183 = scmp.eq.s32.totalorder %s25, 1
      %p184 = por %p182, %p183
      %p186 = scmp.ne.s32.totalorder %s171, %s185
      %p187 = scmp.eq.s32.totalorder %s25, 0
      %p188 = por %p186, %p187
      %s190 = sadd.s32 %s189, 1
      %p193 = scmp.eq.s32.totalorder %s19, 1
      %p194 = scmp.ne.s32.totalorder %s189, %s191
      %p195 = scmp.eq.s32.totalorder %s19, 0
      %p196 = por %p194, %p195
      %p197 = scmp.ne.s32.totalorder %s189, %s191
      %p198 = scmp.eq.s32.totalorder %s24, 1
      %p199 = por %p197, %p198
      %p200 = scmp.ne.s32.totalorder %s191, %s192
      %p201 = scmp.eq.s32.totalorder %s24, 0
      %p202 = por %p200, %p201
      %p203 = scmp.ne.s32.totalorder %s191, %s192
      %p204 = scmp.eq.s32.totalorder %s25, 1
      %p205 = por %p203, %p204
      %p207 = scmp.ne.s32.totalorder %s192, %s206
      %p208 = scmp.eq.s32.totalorder %s25, 0
      %p209 = por %p207, %p208
      %s210 = ssub.s32 %s19, %s26
      %p211 = scmp.eq.s32.totalorder %s210, 0
      %s213 = sadd.s32 %s212, 1
      %s214 = scalar_select %p211, %s212, %s213
      %p217 = pneg %p211
      %p218 = scmp.eq.s32.totalorder %s19, 1
      %p219 = por %p217, %p218
      %p220 = scmp.ne.s32.totalorder %s212, %s215
      %p221 = scmp.eq.s32.totalorder %s19, 0
      %p222 = por %p220, %p221
      %p223 = scmp.ne.s32.totalorder %s212, %s215
      %p224 = scmp.eq.s32.totalorder %s24, 1
      %p225 = por %p223, %p224
      %p226 = scmp.ne.s32.totalorder %s215, %s216
      %p227 = scmp.eq.s32.totalorder %s24, 0
      %p228 = por %p226, %p227
      %p229 = scmp.ne.s32.totalorder %s215, %s216
      %p230 = scmp.eq.s32.totalorder %s25, 1
      %p231 = por %p229, %p230
      %p233 = scmp.ne.s32.totalorder %s216, %s232
      %p234 = scmp.eq.s32.totalorder %s25, 0
      %p235 = por %p233, %p234
      %p236 = scmp.le.s32.totalorder 1, %s19
      %p237 = scmp.lt.s32.totalorder %s19, 3
      %p238 = pnand %p236, %p237
      %p239 = pneg %p238
      // Predicated region
      $region9: #{tpu_custom_call.1} parent=5 // pred_check
        _
      $region10: #{tpu_custom_call.1} parent=5 // pred_check_branch
        %241 = sbr.rel (%p238) target = $region12
      $region11: #{tpu_custom_call.1} parent=5 // pred_region
        %s242 = ssub.s32 %s19, 1
        // Predicated region
        $region13: #{tpu_custom_call.1} parent=11 // pred_check
          %p243 = pneg %p66
        $region14: #{tpu_custom_call.1} parent=11 // pred_check_branch
          %245 = sbr.rel (%p243) target = $region16
        $region15: #{tpu_custom_call.1} parent=11 // pred_region
          _
        $region16: #{tpu_custom_call.1} parent=11 // pred_fallthru
          _
        // Predicated region
        $region17: #{tpu_custom_call.1} parent=11 // pred_check
          %p246 = pneg %p113
        $region18: #{tpu_custom_call.1} parent=11 // pred_check_branch
          %248 = sbr.rel (%p246) target = $region20
        $region19: #{tpu_custom_call.1} parent=11 // pred_region
          _
        $region20: #{tpu_custom_call.1} parent=11 // pred_fallthru
          _
        // Predicated region
        $region21: #{tpu_custom_call.1} parent=11 // pred_check
          %p249 = pneg %p134
        $region22: #{tpu_custom_call.1} parent=11 // pred_check_branch
          %251 = sbr.rel (%p249) target = $region24
        $region23: #{tpu_custom_call.1} parent=11 // pred_region
          %s253 = ssub.s32 2048, 2048
          %254 = vsyncadd [#allocation3], %s253
          %s255 = sshll.u32 [#allocation2], 4
          %s256 = int_to_ptr.vmem [resolvable:$true] %s255
          %261 = dma.hbm_to_vmem [thread:$0]  %s4, 2048, %s256, [#allocation3], 128, 128, 8
        $region24: #{tpu_custom_call.1} parent=11 // pred_fallthru
          _
        // Predicated region
        $region25: #{tpu_custom_call.1} parent=11 // pred_check
          %p262 = pneg %p181
        $region26: #{tpu_custom_call.1} parent=11 // pred_check_branch
          %264 = sbr.rel (%p262) target = $region28
        $region27: #{tpu_custom_call.1} parent=11 // pred_region
          %s266 = ssub.s32 2048, 2048
          %267 = vsyncadd [#allocation6], %s266
          %s268 = sshll.u32 [#allocation5], 4
          %s269 = int_to_ptr.vmem [resolvable:$true] %s268
          %274 = dma.hbm_to_vmem [thread:$0]  %s6, 2048, %s269, [#allocation6], 128, 128, 8
        $region28: #{tpu_custom_call.1} parent=11 // pred_fallthru
          _
        // Predicated region
        $region29: #{tpu_custom_call.1} parent=11 // pred_check
          %p275 = pneg %p202
        $region30: #{tpu_custom_call.1} parent=11 // pred_check_branch
          %277 = sbr.rel (%p275) target = $region32
        $region31: #{tpu_custom_call.1} parent=11 // pred_region
          _
        $region32: #{tpu_custom_call.1} parent=11 // pred_fallthru
          _
      $region12: #{tpu_custom_call.1} parent=5 // pred_fallthru
        _
      %p278 = scmp.lt.s32.totalorder %s19, 2
      // Predicated region
      $region33: #{tpu_custom_call.1} parent=5 // pred_check
        %p279 = pneg %p278
      $region34: #{tpu_custom_call.1} parent=5 // pred_check_branch
        %281 = sbr.rel (%p279) target = $region36
      $region35: #{tpu_custom_call.1} parent=5 // pred_region
        // Predicated region
        $region37: #{tpu_custom_call.1} parent=35 // pred_check
          %p282 = pneg %p39
        $region38: #{tpu_custom_call.1} parent=35 // pred_check_branch
          %284 = sbr.rel (%p282) target = $region40
        $region39: #{tpu_custom_call.1} parent=35 // pred_region
          %s285 = smul.u32 2, %s19
          %p286 = scmp.lt.s32.totalorder %s285, 3
          %s287 = scalar_select %p286, %s285, 3
          %s288 = smul.addr %s287, 8
          %s289 = scalar_lea.vmem %s0, %s288
          %s290 = smul.u32 2, %s19
        $region40: #{tpu_custom_call.1} parent=35 // pred_fallthru
          _
        // Predicated region
        $region41: #{tpu_custom_call.1} parent=35 // pred_check
          %p291 = pneg %p86
        $region42: #{tpu_custom_call.1} parent=35 // pred_check_branch
          %293 = sbr.rel (%p291) target = $region44
        $region43: #{tpu_custom_call.1} parent=35 // pred_region
          %s294 = smul.u32 2, %s19
          %p295 = scmp.lt.s32.totalorder %s294, 3
          %s296 = scalar_select %p295, %s294, 3
          %s297 = smul.addr %s296, 8
          %s298 = scalar_lea.vmem %s2, %s297
          %s299 = smul.u32 2, %s19
        $region44: #{tpu_custom_call.1} parent=35 // pred_fallthru
          _
        // Predicated region
        $region45: #{tpu_custom_call.1} parent=35 // pred_check
          %p300 = pneg %p154
        $region46: #{tpu_custom_call.1} parent=35 // pred_check_branch
          %302 = sbr.rel (%p300) target = $region48
        $region47: #{tpu_custom_call.1} parent=35 // pred_region
          %s303 = smul.u32 2, %s19
          %p304 = scmp.lt.s32.totalorder %s303, 3
          %s305 = scalar_select %p304, %s303, 3
          %s306 = smul.addr %s305, 8
          %s307 = scalar_lea.vmem %s5, %s306
          %s308 = smul.u32 2, %s19
        $region48: #{tpu_custom_call.1} parent=35 // pred_fallthru
          _
      $region36: #{tpu_custom_call.1} parent=5 // pred_fallthru
        _
      %p309 = scmp.le.s32.totalorder 1, %s19
      %p310 = scmp.lt.s32.totalorder %s19, 3
      %p311 = pnand %p309, %p310
      %p312 = pneg %p311
      // Predicated region
      $region49: #{tpu_custom_call.1} parent=5 // pred_check
        _
      $region50: #{tpu_custom_call.1} parent=5 // pred_check_branch
        %314 = sbr.rel (%p311) target = $region52
      $region51: #{tpu_custom_call.1} parent=5 // pred_region
        %s315 = ssub.s32 %s19, 1
        // Predicated region
        $region53: #{tpu_custom_call.1} parent=51 // pred_check
          %p316 = pneg %p134
        $region54: #{tpu_custom_call.1} parent=51 // pred_check_branch
          %318 = sbr.rel (%p316) target = $region56
        $region55: #{tpu_custom_call.1} parent=51 // pred_region
          %319 = dma.done [#allocation3], 2048
        $region56: #{tpu_custom_call.1} parent=51 // pred_fallthru
          _
        // Predicated region
        $region57: #{tpu_custom_call.1} parent=51 // pred_check
          %p320 = pneg %p181
        $region58: #{tpu_custom_call.1} parent=51 // pred_check_branch
          %322 = sbr.rel (%p320) target = $region60
        $region59: #{tpu_custom_call.1} parent=51 // pred_region
          %323 = dma.done [#allocation6], 2048
        $region60: #{tpu_custom_call.1} parent=51 // pred_fallthru
          _
        %s324 = smul.u32 2, %s24
        %p325 = scmp.lt.s32.totalorder %s324, 3
        %s326 = scalar_select %p325, %s324, 3
        %s327 = smul.addr %s326, 8
        %s328 = scalar_lea.vmem %s0, %s327
        %p329 = pneg %p45
        %p330 = pneg %p42
        %p331 = pneg %p66
        %p332 = pneg %p63
        %s333 = smul.u32 2, %s24
        %p334 = scmp.lt.s32.totalorder %s333, 3
        %s335 = scalar_select %p334, %s333, 3
        %s336 = smul.addr %s335, 8
        %s337 = scalar_lea.vmem %s2, %s336
        %p338 = pneg %p92
        %p339 = pneg %p89
        %p340 = pneg %p113
        %p341 = pneg %p110
        %p342 = pneg %p134
        %p343 = pneg %p131
        %s344 = smul.u32 2, %s24
        %p345 = scmp.lt.s32.totalorder %s344, 3
        %s346 = scalar_select %p345, %s344, 3
        %s347 = smul.addr %s346, 8
        %s348 = scalar_lea.vmem %s5, %s347
        %p349 = pneg %p160
        %p350 = pneg %p157
        %p351 = pneg %p181
        %p352 = pneg %p178
        %p353 = pneg %p202
        %p354 = pneg %p199
        %p355 = pneg %p228
        %p356 = pneg %p225
        %s357 = sand.u32 %s215, 1
        %s358 = scalar_lea.sflag [#allocation4], %s357
        %s359 = sand.u32 %s215, 1
        %s360 = smul.addr %s359, 16
        %s361 = scalar_lea.vmem [#allocation7], %s360
        %s362 = smul.u32 2, %s24
        %p363 = scmp.lt.s32.totalorder %s362, 3
        %s364 = scalar_select %p363, %s362, 3
        %s365 = smul.addr %s364, 8
        %s366 = scalar_lea.vmem %s0, %s365
        %s367 = smul.u32 2, %s24
        %s368 = smul.u32 2, %s24
        %p369 = scmp.lt.s32.totalorder %s368, 3
        %s370 = scalar_select %p369, %s368, 3
        %s371 = smul.addr %s370, 8
        %s372 = scalar_lea.vmem %s2, %s371
        %s373 = smul.u32 2, %s24
        %s374 = smul.u32 2, %s24
        %p375 = scmp.lt.s32.totalorder %s374, 3
        %s376 = scalar_select %p375, %s374, 3
        %s377 = smul.addr %s376, 8
        %s378 = scalar_lea.vmem %s5, %s377
        %s379 = smul.u32 2, %s24
        %s380 = smul.u32 2, %s24
        %v381 = vld [vmem:[%s366] sm:$0xff]
        %v382 = vld [vmem:[%s366 + $0x8] sm:$0xff]
        %v383 = vld [vmem:[%s1] sm:$0x1f]
        %vm384 = vcmask 39936
        %v386 = vsel %vm384, %v381, 0
        %v389 = vsel %vm384, %v382, 0
        %vm391 = vcmask 1044480
        %v393 = vsel %vm391, %v383, 0
        %395 = vmatprep.subr.mxu0 0.0
        %396 = vmatpush1.msra.mxu0 %v393
        %397 = vmatprep.subr.mxu0 0.0
        %398 = vmatpush1.msra.mxu0 0.0
        %399 = vmatprep.subr.mxu0 0.0
        %400 = vmatpush1.msra.mxu0 0.0
        %401 = vmatprep.subr.mxu0 0.0
        %402 = vmatpush1.msra.mxu0 0.0
        %403 = vmatprep.subr.mxu0 0.0
        %404 = vmatpush1.msra.mxu0 0.0
        %405 = vmatprep.subr.mxu0 0.0
        %406 = vmatpush1.msra.mxu0 0.0
        %407 = vmatprep.subr.mxu0 0.0
        %408 = vmatpush1.msra.mxu0 0.0
        %409 = vmatprep.subr.mxu0 0.0
        %410 = vmatpush1.msra.mxu0 0.0
        %411 = vmatprep.subr.mxu0 0.0
        %412 = vmatpush1.msra.mxu0 0.0
        %413 = vmatprep.subr.mxu0 0.0
        %414 = vmatpush1.msra.mxu0 0.0
        %415 = vmatprep.subr.mxu0 0.0
        %416 = vmatpush1.msra.mxu0 0.0
        %417 = vmatprep.subr.mxu0 0.0
        %418 = vmatpush1.msra.mxu0 0.0
        %419 = vmatprep.subr.mxu0 0.0
        %420 = vmatpush1.msra.mxu0 0.0
        %421 = vmatprep.subr.mxu0 0.0
        %422 = vmatpush1.msra.mxu0 0.0
        %423 = vmatprep.subr.mxu0 0.0
        %424 = vmatpush1.msra.mxu0 0.0
        %425 = vmatprep.subr.mxu0 0.0
        %426 = vmatpush1.msra.mxu0 0.0
        %427 = vmatprep.subr.mxu0 0.0
        %428 = vmatpush1.msra.mxu0 0.0
        %429 = vmatprep.subr.mxu0 0.0
        %430 = vmatpush1.msra.mxu0 0.0
        %431 = vmatprep.subr.mxu0 0.0
        %432 = vmatpush1.msra.mxu0 0.0
        %433 = vmatprep.subr.mxu0 0.0
        %434 = vmatpush1.msra.mxu0 0.0
        %435 = vmatprep.subr.mxu0 0.0
        %436 = vmatpush1.msra.mxu0 0.0
        %437 = vmatprep.subr.mxu0 0.0
        %438 = vmatpush1.msra.mxu0 0.0
        %439 = vmatprep.subr.mxu0 0.0
        %440 = vmatpush1.msra.mxu0 0.0
        %441 = vmatprep.subr.mxu0 0.0
        %442 = vmatpush1.msra.mxu0 0.0
        %443 = vmatprep.subr.mxu0 0.0
        %444 = vmatpush1.msra.mxu0 0.0
        %445 = vmatprep.subr.mxu0 0.0
        %446 = vmatpush1.msra.mxu0 0.0
        %447 = vmatprep.subr.mxu0 0.0
        %448 = vmatpush1.msra.mxu0 0.0
        %449 = vmatprep.subr.mxu0 0.0
        %450 = vmatpush1.msra.mxu0 0.0
        %451 = vmatprep.subr.mxu0 0.0
        %452 = vmatpush1.msra.mxu0 0.0
        %453 = vmatprep.subr.mxu0 0.0
        %454 = vmatpush1.msra.mxu0 0.0
        %455 = vmatprep.subr.mxu0 0.0
        %456 = vmatpush1.msra.mxu0 0.0
        %457 = vmatprep.subr.mxu0 0.0
        %458 = vmatpush1.msra.mxu0 0.0
        %459 = vmatprep.mubr.f32.mxu0 0.0
        %460 = vmatmul.mubr.f32.gmra.mrb[0].mxu0 %v386
        %v461 = vpop.f32.mrb[0].mxu0
        %v462 = vadd.f32 0.0, %v461
        %v463 = vpop.f32.mrb[0].mxu0
        %464 = vmatprep.mubr.f32.mxu0 0.0
        %465 = vmatmul.mubr.f32.gmra.mrb[0].mxu0 %v389
        %v466 = vpop.f32.mrb[0].mxu0
        %v467 = vadd.f32 0.0, %v466
        %v468 = vpop.f32.mrb[0].mxu0
        %469 = vdwg.mxu0
        %v470 = vmax.f32 %v462, 0.0
        %v471 = vmax.f32 %v467, 0.0
        %v472 = vld [vmem:[%s372] sm:$0xff]
        %v473 = vld [vmem:[%s372 + $0x8] sm:$0xff]
        %v474 = vld [vmem:[%s3] sm:$0x1]
        %475 = vset.pattern.permute.xlu0 0
        %476 = vperm.xlu0 %475, %v472
        %v477 = vpop.permute.xlu0 %476
        %478 = vset.pattern.permute.xlu0 0
        %479 = vperm.xlu0 %478, %v473
        %v480 = vpop.permute.xlu0 %479
        %v481 = vlaneseq
        %v482 = vshrl.u32 %v481, 7
        %v483 = vsub.s32 0, %v482
        %v484 = vrot.slane %v474, %v483
        %vm485 = vcmp.eq.s32.totalorder %v477, %v484
        %vm486 = vcmp.eq.s32.totalorder %v480, %v484
        %v487 = vsel %vm485, %v470, 1e+30
        %v488 = vsel %vm486, %v471, 1e+30
        %489 = vmin.xlane.f32.xlu0 %v487
        %v490 = vpop.xlane.xlu0 %489
        %491 = vmin.xlane.f32.xlu0 %v488
        %v492 = vpop.xlane.xlu0 %491
        %vm493 = vcmp.eq.f32.partialorder %v487, %v490
        %vm494 = vcmp.eq.f32.partialorder %v488, %v492
        %v495 = vmax.f32 %v490, 1e-16
        %v496 = vmax.f32 %v492, 1e-16
        %v497 = vrcp.pop %v495
        %v498 = vrcp.pop %v496
        %v499 = vmul.f32 %v495, %v497
        %v500 = vmul.f32 %v496, %v498
        %v501 = vsub.f32 2.0, %v499
        %v502 = vsub.f32 2.0, %v500
        %v503 = vmul.f32 %v497, %v501
        %v504 = vmul.f32 %v498, %v502
        %v505 = vsel %vm493, %v503, 0.0
        %v506 = vsel %vm494, %v504, 0.0
        %v507 = vadd.f32 %v503, 0.0
        %v508 = vadd.f32 %v504, 0.0
        %v509 = vsel %vm493, 1e+30, %v487
        %v510 = vsel %vm494, 1e+30, %v488
        %511 = vmin.xlane.f32.xlu0 %v509
        %v512 = vpop.xlane.xlu0 %511
        %513 = vmin.xlane.f32.xlu0 %v510
        %v514 = vpop.xlane.xlu0 %513
        %vm515 = vcmp.eq.f32.partialorder %v509, %v512
        %vm516 = vcmp.eq.f32.partialorder %v510, %v514
        %v517 = vmax.f32 %v512, 1e-16
        %v518 = vmax.f32 %v514, 1e-16
        %v519 = vrcp.pop %v517
        %v520 = vrcp.pop %v518
        %v521 = vmul.f32 %v517, %v519
        %v522 = vmul.f32 %v518, %v520
        %v523 = vsub.f32 2.0, %v521
        %v524 = vsub.f32 2.0, %v522
        %v525 = vmul.f32 %v519, %v523
        %v526 = vmul.f32 %v520, %v524
        %v527 = vsel %vm515, %v525, %v505
        %v528 = vsel %vm516, %v526, %v506
        %v529 = vadd.f32 %v507, %v525
        %v530 = vadd.f32 %v508, %v526
        %v531 = vsel %vm515, 1e+30, %v509
        %v532 = vsel %vm516, 1e+30, %v510
        %533 = vmin.xlane.f32.xlu0 %v531
        %v534 = vpop.xlane.xlu0 %533
        %535 = vmin.xlane.f32.xlu0 %v532
        %v536 = vpop.xlane.xlu0 %535
        %vm537 = vcmp.eq.f32.partialorder %v531, %v534
        %vm538 = vcmp.eq.f32.partialorder %v532, %v536
        %v539 = vmax.f32 %v534, 1e-16
        %v540 = vmax.f32 %v536, 1e-16
        %v541 = vrcp.pop %v539
        %v542 = vrcp.pop %v540
        %v543 = vmul.f32 %v539, %v541
        %v544 = vmul.f32 %v540, %v542
        %v545 = vsub.f32 2.0, %v543
        %v546 = vsub.f32 2.0, %v544
        %v547 = vmul.f32 %v541, %v545
        %v548 = vmul.f32 %v542, %v546
        %v549 = vsel %vm537, %v547, %v527
        %v550 = vsel %vm538, %v548, %v528
        %v551 = vadd.f32 %v529, %v547
        %v552 = vadd.f32 %v530, %v548
        %v553 = vld [vmem:[#allocation2] sm:$0xff]
        %v554 = vld [vmem:[#allocation2 + $0x8] sm:$0xff]
        %v555 = vld [vmem:[#allocation2 + $0x10] sm:$0xff]
        %v556 = vld [vmem:[#allocation2 + $0x18] sm:$0xff]
        %v557 = vld [vmem:[#allocation2 + $0x20] sm:$0xff]
        %v558 = vld [vmem:[#allocation2 + $0x28] sm:$0xff]
        %v559 = vld [vmem:[#allocation2 + $0x30] sm:$0xff]
        %v560 = vld [vmem:[#allocation2 + $0x38] sm:$0xff]
        %v561 = vld [vmem:[#allocation2 + $0x40] sm:$0xff]
        %v562 = vld [vmem:[#allocation2 + $0x48] sm:$0xff]
        %v563 = vld [vmem:[#allocation2 + $0x50] sm:$0xff]
        %v564 = vld [vmem:[#allocation2 + $0x58] sm:$0xff]
        %v565 = vld [vmem:[#allocation2 + $0x60] sm:$0xff]
        %v566 = vld [vmem:[#allocation2 + $0x68] sm:$0xff]
        %v567 = vld [vmem:[#allocation2 + $0x70] sm:$0xff]
        %v568 = vld [vmem:[#allocation2 + $0x78] sm:$0xff]
        %569 = vmatprep.subr.mxu0 0.0
        %570 = vmatpush1.msra.mxu0 %v553
        %571 = vmatprep.subr.mxu0 0.0
        %572 = vmatpush1.msra.mxu0 %v554
        %573 = vmatprep.subr.mxu0 0.0
        %574 = vmatpush1.msra.mxu0 %v555
        %575 = vmatprep.subr.mxu0 0.0
        %576 = vmatpush1.msra.mxu0 %v556
        %577 = vmatprep.subr.mxu0 0.0
        %578 = vmatpush1.msra.mxu0 %v557
        %579 = vmatprep.subr.mxu0 0.0
        %580 = vmatpush1.msra.mxu0 %v558
        %581 = vmatprep.subr.mxu0 0.0
        %582 = vmatpush1.msra.mxu0 %v559
        %583 = vmatprep.subr.mxu0 0.0
        %584 = vmatpush1.msra.mxu0 %v560
        %585 = vmatprep.subr.mxu0 0.0
        %586 = vmatpush1.msra.mxu0 %v561
        %587 = vmatprep.subr.mxu0 0.0
        %588 = vmatpush1.msra.mxu0 %v562
        %589 = vmatprep.subr.mxu0 0.0
        %590 = vmatpush1.msra.mxu0 %v563
        %591 = vmatprep.subr.mxu0 0.0
        %592 = vmatpush1.msra.mxu0 %v564
        %593 = vmatprep.subr.mxu0 0.0
        %594 = vmatpush1.msra.mxu0 %v565
        %595 = vmatprep.subr.mxu0 0.0
        %596 = vmatpush1.msra.mxu0 %v566
        %597 = vmatprep.subr.mxu0 0.0
        %598 = vmatpush1.msra.mxu0 %v567
        %599 = vmatprep.subr.mxu0 0.0
        %600 = vmatpush1.msra.mxu0 %v568
        %601 = vmatprep.subr.mxu0 0.0
        %602 = vmatpush1.msra.mxu0 0.0
        %603 = vmatprep.subr.mxu0 0.0
        %604 = vmatpush1.msra.mxu0 0.0
        %605 = vmatprep.subr.mxu0 0.0
        %606 = vmatpush1.msra.mxu0 0.0
        %607 = vmatprep.subr.mxu0 0.0
        %608 = vmatpush1.msra.mxu0 0.0
        %609 = vmatprep.subr.mxu0 0.0
        %610 = vmatpush1.msra.mxu0 0.0
        %611 = vmatprep.subr.mxu0 0.0
        %612 = vmatpush1.msra.mxu0 0.0
        %613 = vmatprep.subr.mxu0 0.0
        %614 = vmatpush1.msra.mxu0 0.0
        %615 = vmatprep.subr.mxu0 0.0
        %616 = vmatpush1.msra.mxu0 0.0
        %617 = vmatprep.subr.mxu0 0.0
        %618 = vmatpush1.msra.mxu0 0.0
        %619 = vmatprep.subr.mxu0 0.0
        %620 = vmatpush1.msra.mxu0 0.0
        %621 = vmatprep.subr.mxu0 0.0
        %622 = vmatpush1.msra.mxu0 0.0
        %623 = vmatprep.subr.mxu0 0.0
        %624 = vmatpush1.msra.mxu0 0.0
        %625 = vmatprep.subr.mxu0 0.0
        %626 = vmatpush1.msra.mxu0 0.0
        %627 = vmatprep.subr.mxu0 0.0
        %628 = vmatpush1.msra.mxu0 0.0
        %629 = vmatprep.subr.mxu0 0.0
        %630 = vmatpush1.msra.mxu0 0.0
        %631 = vmatprep.subr.mxu0 0.0
        %632 = vmatpush1.msra.mxu0 0.0
        %633 = vmatprep.mubr.f32.mxu0 0.0
        %634 = vmatmul.mubr.f32.gmra.mrb[0].mxu0 %v549
        %v635 = vpop.f32.mrb[0].mxu0
        %v636 = vadd.f32 0.0, %v635
        %v637 = vpop.f32.mrb[0].mxu0
        %638 = vmatprep.mubr.f32.mxu0 0.0
        %639 = vmatmul.mubr.f32.gmra.mrb[0].mxu0 %v550
        %v640 = vpop.f32.mrb[0].mxu0
        %v641 = vadd.f32 0.0, %v640
        %v642 = vpop.f32.mrb[0].mxu0
        %643 = vdwg.mxu0
        %v644 = vrcp.pop %v551
        %v645 = vrcp.pop %v552
        %v646 = vmul.f32 %v551, %v644
        %v647 = vmul.f32 %v552, %v645
        %v648 = vsub.f32 2.0, %v646
        %v649 = vsub.f32 2.0, %v647
        %v650 = vmul.f32 %v644, %v648
        %v651 = vmul.f32 %v645, %v649
        %v652 = vmul.f32 %v636, %v650
        %v653 = vmul.f32 %v641, %v651
        %v654 = vld [vmem:[%s378] sm:$0xff]
        %v655 = vld [vmem:[%s378 + $0x8] sm:$0xff]
        %v656 = vadd.f32 %v652, %v654
        %v657 = vadd.f32 %v653, %v655
        %v658 = vmax.f32 %v656, 0.0
        %v659 = vmax.f32 %v657, 0.0
        %v660 = vld [vmem:[#allocation5] sm:$0xff]
        %v661 = vld [vmem:[#allocation5 + $0x8] sm:$0xff]
        %v662 = vld [vmem:[#allocation5 + $0x10] sm:$0xff]
        %v663 = vld [vmem:[#allocation5 + $0x18] sm:$0xff]
        %v664 = vld [vmem:[#allocation5 + $0x20] sm:$0xff]
        %v665 = vld [vmem:[#allocation5 + $0x28] sm:$0xff]
        %v666 = vld [vmem:[#allocation5 + $0x30] sm:$0xff]
        %v667 = vld [vmem:[#allocation5 + $0x38] sm:$0xff]
        %v668 = vld [vmem:[#allocation5 + $0x40] sm:$0xff]
        %v669 = vld [vmem:[#allocation5 + $0x48] sm:$0xff]
        %v670 = vld [vmem:[#allocation5 + $0x50] sm:$0xff]
        %v671 = vld [vmem:[#allocation5 + $0x58] sm:$0xff]
        %v672 = vld [vmem:[#allocation5 + $0x60] sm:$0xff]
        %v673 = vld [vmem:[#allocation5 + $0x68] sm:$0xff]
        %v674 = vld [vmem:[#allocation5 + $0x70] sm:$0xff]
        %v675 = vld [vmem:[#allocation5 + $0x78] sm:$0xff]
        %v676 = vld [vmem:[%s7] sm:$0x1]
        %v678 = vlaneseq
        %v679 = vshrl.u32 %v678, 7
        %v680 = vsub.s32 0, %v679
        %v681 = vrot.slane %v676, %v680
        %683 = vmatprep.subr.mxu0 0.0
        %684 = vmatpush1.msra.mxu0 %v660
        %685 = vmatprep.subr.mxu0 0.0
        %686 = vmatpush1.msra.mxu0 %v661
        %687 = vmatprep.subr.mxu0 0.0
        %688 = vmatpush1.msra.mxu0 %v662
        %689 = vmatprep.subr.mxu0 0.0
        %690 = vmatpush1.msra.mxu0 %v663
        %691 = vmatprep.subr.mxu0 0.0
        %692 = vmatpush1.msra.mxu0 %v664
        %693 = vmatprep.subr.mxu0 0.0
        %694 = vmatpush1.msra.mxu0 %v665
        %695 = vmatprep.subr.mxu0 0.0
        %696 = vmatpush1.msra.mxu0 %v666
        %697 = vmatprep.subr.mxu0 0.0
        %698 = vmatpush1.msra.mxu0 %v667
        %699 = vmatprep.subr.mxu0 0.0
        %700 = vmatpush1.msra.mxu0 %v668
        %701 = vmatprep.subr.mxu0 0.0
        %702 = vmatpush1.msra.mxu0 %v669
        %703 = vmatprep.subr.mxu0 0.0
        %704 = vmatpush1.msra.mxu0 %v670
        %705 = vmatprep.subr.mxu0 0.0
        %706 = vmatpush1.msra.mxu0 %v671
        %707 = vmatprep.subr.mxu0 0.0
        %708 = vmatpush1.msra.mxu0 %v672
        %709 = vmatprep.subr.mxu0 0.0
        %710 = vmatpush1.msra.mxu0 %v673
        %711 = vmatprep.subr.mxu0 0.0
        %712 = vmatpush1.msra.mxu0 %v674
        %713 = vmatprep.subr.mxu0 0.0
        %714 = vmatpush1.msra.mxu0 %v675
        %715 = vmatprep.subr.mxu0 0.0
        %716 = vmatpush1.msra.mxu0 0.0
        %717 = vmatprep.subr.mxu0 0.0
        %718 = vmatpush1.msra.mxu0 0.0
        %719 = vmatprep.subr.mxu0 0.0
        %720 = vmatpush1.msra.mxu0 0.0
        %721 = vmatprep.subr.mxu0 0.0
        %722 = vmatpush1.msra.mxu0 0.0
        %723 = vmatprep.subr.mxu0 0.0
        %724 = vmatpush1.msra.mxu0 0.0
        %725 = vmatprep.subr.mxu0 0.0
        %726 = vmatpush1.msra.mxu0 0.0
        %727 = vmatprep.subr.mxu0 0.0
        %728 = vmatpush1.msra.mxu0 0.0
        %729 = vmatprep.subr.mxu0 0.0
        %730 = vmatpush1.msra.mxu0 0.0
        %731 = vmatprep.subr.mxu0 0.0
        %732 = vmatpush1.msra.mxu0 0.0
        %733 = vmatprep.subr.mxu0 0.0
        %734 = vmatpush1.msra.mxu0 0.0
        %735 = vmatprep.subr.mxu0 0.0
        %736 = vmatpush1.msra.mxu0 0.0
        %737 = vmatprep.subr.mxu0 0.0
        %738 = vmatpush1.msra.mxu0 0.0
        %739 = vmatprep.subr.mxu0 0.0
        %740 = vmatpush1.msra.mxu0 0.0
        %741 = vmatprep.subr.mxu0 0.0
        %742 = vmatpush1.msra.mxu0 0.0
        %743 = vmatprep.subr.mxu0 0.0
        %744 = vmatpush1.msra.mxu0 0.0
        %745 = vmatprep.subr.mxu0 0.0
        %746 = vmatpush1.msra.mxu0 0.0
        %747 = vmatprep.mubr.f32.mxu0 0.0
        %748 = vmatmul.mubr.f32.gmra.mrb[0].mxu0 %v658
        %v749 = vpop.f32.mrb[0].mxu0
        %v750 = vadd.f32 %v681, %v749
        %v751 = vpop.f32.mrb[0].mxu0
        %752 = vmatprep.mubr.f32.mxu0 0.0
        %753 = vmatmul.mubr.f32.gmra.mrb[0].mxu0 %v659
        %v754 = vpop.f32.mrb[0].mxu0
        %v755 = vadd.f32 %v681, %v754
        %v756 = vpop.f32.mrb[0].mxu0
        %757 = vdwg.mxu0
        %758 = vst [vmem:[%s361] sm:$0xff] %v750
        %759 = vst [vmem:[%s361 + $0x8] sm:$0xff] %v755
        %s760 = sand.u32 %s215, 1
        %s761 = scalar_lea.sflag [#allocation4], %s760
        %s762 = sand.u32 %s215, 1
        %s763 = smul.addr %s762, 16
        %s764 = scalar_lea.vmem [#allocation7], %s763
        // Predicated region
        $region61: #{tpu_custom_call.1} parent=51 // pred_check
          %p765 = pneg %p225
        $region62: #{tpu_custom_call.1} parent=51 // pred_check_branch
          %767 = sbr.rel (%p765) target = $region64
        $region63: #{tpu_custom_call.1} parent=51 // pred_region
          %s768 = smul.u32 2, %s24
          %s770 = ssub.s32 256, 256
          %771 = vsyncadd %s761, %s770
          %s772 = smul.addr %s768, 128
          %s773 = scalar_lea.hbm %s8, %s772
          %s774 = sshll.u32 %s764, 4
          %s775 = int_to_ptr.vmem [resolvable:$true] %s774
          %780 = dma.vmem_to_hbm [thread:$0]  %s775, 256, %s773, %s761, 128, 128, 8
        $region64: #{tpu_custom_call.1} parent=51 // pred_fallthru
          _
      $region52: #{tpu_custom_call.1} parent=5 // pred_fallthru
        _
      %p781 = scmp.le.s32.totalorder 2, %s19
      // Predicated region
      $region65: #{tpu_custom_call.1} parent=5 // pred_check
        %p782 = pneg %p781
      $region66: #{tpu_custom_call.1} parent=5 // pred_check_branch
        %784 = sbr.rel (%p782) target = $region68
      $region67: #{tpu_custom_call.1} parent=5 // pred_region
        %s785 = ssub.s32 %s19, 2
        // Predicated region
        $region69: #{tpu_custom_call.1} parent=67 // pred_check
          %p786 = pneg %p231
        $region70: #{tpu_custom_call.1} parent=67 // pred_check_branch
          %788 = sbr.rel (%p786) target = $region72
        $region71: #{tpu_custom_call.1} parent=67 // pred_region
          %s789 = sand.u32 %s216, 1
          %s790 = scalar_lea.sflag [#allocation4], %s789
          %s791 = sand.u32 %s216, 1
          %s792 = smul.addr %s791, 16
          %s793 = scalar_lea.vmem [#allocation7], %s792
          %794 = dma.done %s790, 256
        $region72: #{tpu_custom_call.1} parent=67 // pred_fallthru
          _
      $region68: #{tpu_custom_call.1} parent=5 // pred_fallthru
        _
    $region6: #{tpu_custom_call.1} parent=1 // loop_footer
      %s23 = sadd.s32 1, %s19
    $region7: #{tpu_custom_call.1} parent=1 // loop_footer_branch
      %18 = sbr.rel target = $region3
    $region8: #{tpu_custom_call.1} parent=1 // loop_exit
      _
    %795 = vsyncpa [#allocation3], 1
    %s796 = scalar_lea.sflag [#allocation3], 1
    %797 = vsyncpa %s796, 1
    %798 = vsyncpa [#allocation6], 1
    %799 = vsyncpa [#allocation4], 1
    %s800 = scalar_lea.sflag [#allocation4], 1
    %801 = vsyncpa %s800, 1

</llo_original>
